<compile_context>
chip_gen: v7x
topology: tpu7x:2x2x1
jax: 0.10.0
libtpu: 0.0.40
codegen_flags: <defaults>
</compile_context>

<pallas_src>
import functools

import numpy as np

import jax
import jax.numpy as jnp
from jax import lax
from jax.experimental import pallas as pl
from jax.experimental.pallas import tpu as pltpu


# ----------------------------------------------------------------------------
# Fused kernel: conv1 -> relu -> conv2 -> relu -> flatten -> fc -> relu
#               -> mean -> tanh   (everything stays in VMEM)
# ----------------------------------------------------------------------------
def _actor_fused_kernel(p_ref, w1_ref, b1_ref, w2_ref, b2_ref,
                        wfc_ref, bfc_ref, wm_ref, bm_ref, o_ref,
                        y2_scr, lhs2_scr, feat_scr,
                        *, nr, nc, k2, s2, h_out, w_out):
    n_uniq, bt, k1f = p_ref.shape          # (36, batch tile, C*k1*k1)
    c1 = w1_ref.shape[1]                   # conv1 out channels (16)
    c2 = w2_ref.shape[1]                   # conv2 out channels (32)
    n_pos = h_out * w_out                  # conv2 output positions (4)

    w1 = w1_ref[...].astype(p_ref.dtype)   # one tiny cast (bf16 patches path)
    b1 = b1_ref[...]

    # ---- conv1: one (nr*bt, K1) x (K1, c1) MXU dot per unique conv1 column ----
    # 6 dots with M = nr*bt (vs 64 dots with M = bt before); bias + relu applied
    # once per slab; results staged lane-densely so conv2 becomes a single big dot.
    for c in range(nc):
        x_c = p_ref[c * nr:(c + 1) * nr].reshape(nr * bt, k1f)  # no-op (bt%8==0)
        y_c = jnp.dot(x_c, w1, preferred_element_type=jnp.float32)
        y_c = jnp.maximum(y_c + b1, 0.0)                        # (nr*bt, c1)
        # y2[(r, b), c*c1 + ch] = relu(conv1)[b, ch, r, c]
        y2_scr[:, c * c1:(c + 1) * c1] = y_c

    # ---- assemble conv2 LHS with offsets folded into K (16 block copies) ------
    # lhs2[(p, b), (dh, dw, ch)] = y2[(s2*oh + dh, b), (s2*ow + dw, ch)]
    for oh in range(h_out):
        for ow in range(w_out):
            p = oh * w_out + ow
            for dh in range(k2):
                lhs2_scr[p * bt:(p + 1) * bt,
                         dh * k2 * c1:(dh + 1) * k2 * c1] = \
                    y2_scr[(s2 * oh + dh) * bt:(s2 * oh + dh + 1) * bt,
                           s2 * ow * c1:(s2 * ow + k2) * c1]

    # ---- conv2: ONE (n_pos*bt, k2*k2*c1 = 256) x (256, c2) dot -----------------
    z = jnp.dot(lhs2_scr[...], w2_ref[...], preferred_element_type=jnp.float32)
    z = jnp.maximum(z + b2_ref[...], 0.0)                       # (n_pos*bt, c2)

    # ---- flatten into ONE lane-dense (bt, n_pos*c2 = 128) feature block --------
    for p in range(n_pos):
        feat_scr[:, p * c2:(p + 1) * c2] = z[p * bt:(p + 1) * bt, :]

    # ---- fc + relu, mean head + tanh (single K=128 / K=hidden dots) ------------
    h = jnp.dot(feat_scr[...], wfc_ref[...], preferred_element_type=jnp.float32)
    h = jnp.maximum(h + bfc_ref[...], 0.0)                      # (bt, hidden)
    m = jnp.dot(h, wm_ref[...], preferred_element_type=jnp.float32) + bm_ref[...]
    o_ref[...] = jnp.tanh(m).astype(o_ref.dtype)


# ----------------------------------------------------------------------------
# Trace-time-constant, batch-INDEPENDENT unique-patch index (pure numpy).
# ----------------------------------------------------------------------------
def _unique_patch_index(c_in, h, w, k1, s1, nr, nc):
    """(n_uniq, C*k1*k1) int32 index into a per-sample flat (C*H*W) view.

    Unique conv1 output positions are ordered column-major (u = c*nr + r) so the
    kernel's per-column slabs are contiguous; the feature index k = ch*k1*k1 +
    kh*k1 + kw matches the PyTorch conv1 weight flattening."""
    cg, rg, ch, kh, kw = np.ix_(np.arange(nc), np.arange(nr), np.arange(c_in),
                                np.arange(k1), np.arange(k1))
    flat = (ch * h + (rg * s1 + kh)) * w + (cg * s1 + kw)
    return jnp.asarray(flat.reshape(nc * nr, c_in * k1 * k1).astype(np.int32))


def _pick_bt(n):
    """Batch tile: multiple of 8 (keeps in-kernel (u, bt, K)->(u*bt, K) reshapes
    layout-preserving), <=128 rows (f32 patch block 4.5 MiB x2 buffers fits every
    generation's scoped VMEM), and >=2 grid steps for moderate N so
    dimension_semantics=("parallel",) shards across v7x's two TensorCores."""
    if n <= 8:
        return 8
    if n <= 256:
        return min(128, -(-((n + 1) // 2) // 8) * 8)
    return 128


# ----------------------------------------------------------------------------
# Forward pass (single pallas_call) + x-independent log_std in the wrapper
# ----------------------------------------------------------------------------
def actor_forward(x, kp, action_dim, patches_dtype=jnp.float32):
    """x: (N, C, H, W) NCHW float32.  Returns (action_mean, log_std)."""
    N, C, H, W = x.shape
    k1, s1, k2, s2 = 8, 4, 4, 2                    # fixed by the PyTorch module
    h_c1 = (H - k1) // s1 + 1
    w_c1 = (W - k1) // s1 + 1
    h_c2 = (h_c1 - k2) // s2 + 1
    w_c2 = (w_c1 - k2) // s2 + 1
    assert h_c2 >= 1 and w_c2 >= 1, "input spatial size too small for the conv stack"
    n_pos = h_c2 * w_c2
    nr = s2 * (h_c2 - 1) + k2                      # distinct conv1 rows feeding conv2
    nc = s2 * (w_c2 - 1) + k2                      # distinct conv1 cols feeding conv2
    n_uniq = nr * nc
    K1 = C * k1 * k1

    bt = _pick_bt(N)
    n_pad = pl.cdiv(N, bt) * bt
    grid = (n_pad // bt,)

    # Batch-independent (n_uniq, K1) index; one fused XLA gather produces the
    # patches already in (uniq, batch, K1) order (no wrapper transpose).
    idx = _unique_patch_index(C, H, W, k1, s1, nr, nc)
    xflat = x.reshape(N, C * H * W).astype(patches_dtype)
    if n_pad != N:
        xflat = jnp.pad(xflat, ((0, n_pad - N), (0, 0)))
    patches = jax.vmap(lambda ii: jnp.take(xflat, ii, axis=1))(idx)  # (n_uniq, n_pad, K1)

    a_pad = kp["wm_pad"].shape[1]
    c1 = kp["w1"].shape[1]
    c2 = kp["w2cat"].shape[1]

    kernel = functools.partial(_actor_fused_kernel, nr=nr, nc=nc, k2=k2, s2=s2,
                               h_out=h_c2, w_out=w_c2)

    mean_pad = pl.pallas_call(
        kernel,
        out_shape=jax.ShapeDtypeStruct((n_pad, a_pad), jnp.float32),
        grid_spec=pltpu.PrefetchScalarGridSpec(
            num_scalar_prefetch=0,
            grid=grid,
            in_specs=[
                pl.BlockSpec((n_uniq, bt, K1), lambda b: (0, b, 0)),
                pl.BlockSpec(kp["w1"].shape, lambda b: (0, 0)),
                pl.BlockSpec(kp["b1"].shape, lambda b: (0, 0)),
                pl.BlockSpec(kp["w2cat"].shape, lambda b: (0, 0)),
                pl.BlockSpec(kp["b2"].shape, lambda b: (0, 0)),
                pl.BlockSpec(kp["wfc"].shape, lambda b: (0, 0)),
                pl.BlockSpec(kp["bfc"].shape, lambda b: (0, 0)),
                pl.BlockSpec(kp["wm_pad"].shape, lambda b: (0, 0)),
                pl.BlockSpec(kp["bm_pad"].shape, lambda b: (0, 0)),
            ],
            out_specs=pl.BlockSpec((bt, a_pad), lambda b: (b, 0)),
            scratch_shapes=[
                pltpu.VMEM((nr * bt, nc * c1), jnp.float32),         # staged conv1
                pltpu.VMEM((n_pos * bt, k2 * k2 * c1), jnp.float32),  # conv2 LHS
                pltpu.VMEM((bt, n_pos * c2), jnp.float32),            # fc features
            ]),
        compiler_params=pltpu.CompilerParams(
            dimension_semantics=("parallel",),
            vmem_limit_bytes=32 * 1024 * 1024),
    )(patches, kp["w1"], kp["b1"], kp["w2cat"], kp["b2"],
      kp["wfc"], kp["bfc"], kp["wm_pad"], kp["bm_pad"])

    mean = mean_pad[:N, :action_dim]
    # log_std: x-independent clamp + broadcast, kept out of the kernel.
    log_std = jnp.broadcast_to(
        jnp.clip(kp["log_std"], -2.0, 0.0)[None, :], (N, action_dim))
    return mean, log_std


# ----------------------------------------------------------------------------
# One-time weight re-layout for the kernel (pure reshapes / transposes / pads)
# ----------------------------------------------------------------------------
def prepare_kernel_params(params, hidden_dim, action_dim, n_pos, k2=4, c1=16, c2=32):
    a_pad = 128 * pl.cdiv(max(action_dim, 1), 128)
    # conv2 weight rows (ch, dh, dw) -> (dh, dw, ch): single (256, 32) RHS.
    w2cat = params["w2"].reshape(c1, k2, k2, c2).transpose(1, 2, 0, 3)
    w2cat = w2cat.reshape(k2 * k2 * c1, c2)
    # fc weight rows (ch, pos) -> (pos, ch): matches the kernel's lane-dense
    # (bt, n_pos*c2) feature block.
    wfc = params["w_fc"].reshape(c2, n_pos, hidden_dim).transpose(1, 0, 2)
    wfc = wfc.reshape(n_pos * c2, hidden_dim)
    wm_pad = jnp.zeros((hidden_dim, a_pad), jnp.float32)
    wm_pad = wm_pad.at[:, :action_dim].set(params["w_mean"])
    bm_pad = jnp.zeros((1, a_pad), jnp.float32)
    bm_pad = bm_pad.at[0, :action_dim].set(params["b_mean"])
    return dict(
        w1=params["w1"],                        # (C*64, 16), rows (c, kh, kw)
        b1=params["b1"].reshape(1, c1),
        w2cat=w2cat,                            # (256, 32), rows (dh, dw, ch)
        b2=params["b2"].reshape(1, c2),
        wfc=wfc,                                # (n_pos*32, hidden), rows (pos, ch)
        bfc=params["b_fc"].reshape(1, hidden_dim),
        wm_pad=wm_pad,                          # (hidden, 128) zero-padded
        bm_pad=bm_pad,                          # (1, 128) zero-padded
        log_std=params["log_std"],
    )


# ----------------------------------------------------------------------------
# Pure-JAX reference (for correctness of the Pallas path)
# ----------------------------------------------------------------------------
def actor_forward_ref(x, params):
    N = x.shape[0]
    w1 = params["w1"].T.reshape(16, x.shape[1], 8, 8)
    w2 = params["w2"].T.reshape(32, 16, 4, 4)
    y1 = lax.conv_general_dilated(x, w1, (4, 4), "VALID",
                                  dimension_numbers=("NCHW", "OIHW", "NCHW"))
    y1 = jnp.maximum(y1 + params["b1"][None, :, None, None], 0.0)
    y2 = lax.conv_general_dilated(y1, w2, (2, 2), "VALID",
                                  dimension_numbers=("NCHW", "OIHW", "NCHW"))
    y2 = jnp.maximum(y2 + params["b2"][None, :, None, None], 0.0)
    feats = y2.reshape(N, -1)
    h = jnp.maximum(feats @ params["w_fc"] + params["b_fc"], 0.0)
    mean = jnp.tanh(h @ params["w_mean"] + params["b_mean"])
    log_std = jnp.clip(params["log_std"], -2.0, 0.0)
    log_std = jnp.broadcast_to(log_std[None, :], mean.shape)
    return mean, log_std


# ----------------------------------------------------------------------------
# Deterministic parameter init (shapes from the PyTorch module __init__)
# ----------------------------------------------------------------------------
def init_params(key, in_ch, hidden_dim, action_dim, feature_size):
    ks = jax.random.split(key, 8)

    def unif(k, shape, fan_in):
        bound = 1.0 / jnp.sqrt(fan_in)
        return jax.random.uniform(k, shape, jnp.float32, -bound, bound)

    # conv / fc weights stored in "matmul-natural" layout: (in_features, out)
    w1 = unif(ks[0], (16, in_ch * 8 * 8), in_ch * 8 * 8).T      # rows (c, kh, kw)
    b1 = unif(ks[1], (16,), in_ch * 8 * 8)
    w2 = unif(ks[2], (32, 16 * 4 * 4), 16 * 4 * 4).T            # rows (c, kh, kw)
    b2 = unif(ks[3], (32,), 16 * 4 * 4)
    w_fc = unif(ks[4], (hidden_dim, feature_size), feature_size).T
    b_fc = unif(ks[5], (hidden_dim,), feature_size)
    w_mean = unif(ks[6], (action_dim, hidden_dim), hidden_dim).T
    b_mean = unif(ks[7], (action_dim,), hidden_dim)
    log_std = jnp.zeros((action_dim,), jnp.float32) - 0.5
    return dict(w1=w1, b1=b1, w2=w2, b2=b2, w_fc=w_fc, b_fc=b_fc,
                w_mean=w_mean, b_mean=b_mean, log_std=log_std)


if __name__ == "__main__":
    # small shapes: batch=2, input_shape=(4, 32, 32), action_dim=6, hidden=64
    # (spatial 32 is the smallest clean size for the k=8/s=4 -> k=4/s=2 stack)
    B, C, H, W = 2, 4, 32, 32
    action_dim, hidden_dim = 6, 64
    c1h = (H - 8) // 4 + 1
    c1w = (W - 8) // 4 + 1
    c2h = (c1h - 4) // 2 + 1
    c2w = (c1w - 4) // 2 + 1
    n_pos = c2h * c2w
    feature_size = n_pos * 32                  # = 128

    key = jax.random.PRNGKey(0)
    kx, kparam = jax.random.split(key)
    x = jax.random.normal(kx, (B, C, H, W), jnp.float32)
    params = init_params(kparam, C, hidden_dim, action_dim, feature_size)
    kparams = prepare_kernel_params(params, hidden_dim, action_dim, n_pos)

    fwd = jax.jit(functools.partial(actor_forward, action_dim=action_dim))
    mean, log_std = jax.block_until_ready(fwd(x, kparams))

    mean_ref, log_std_ref = actor_forward_ref(x, params)

    assert mean.shape == (B, action_dim) and log_std.shape == (B, action_dim)
    assert jnp.allclose(mean, mean_ref, atol=2e-5, rtol=2e-5)
    assert jnp.allclose(log_std, log_std_ref, atol=1e-6, rtol=1e-6)

    # bf16 patches stream: halves the dominant HBM traffic at large PPO batches.
    # (loose tolerance: conv1 inputs/weights are rounded to bf16, rest stays f32)
    fwd_bf16 = jax.jit(functools.partial(
        actor_forward, action_dim=action_dim, patches_dtype=jnp.bfloat16))
    mean_bf16, _ = jax.block_until_ready(fwd_bf16(x, kparams))
    assert jnp.allclose(mean_bf16, mean_ref, atol=5e-2)

    print("KERNEL_OK")
</pallas_src>

<mosaic_0001>
module attributes {stable_mosaic.version = 11 : i64} {
  func.func @_actor_fused_kernel(%arg0: i32, %arg1: memref<36x8x256xf32, #tpu.memory_space<vmem>>, %arg2: memref<256x16xf32, #tpu.memory_space<vmem>>, %arg3: memref<1x16xf32, #tpu.memory_space<vmem>>, %arg4: memref<256x32xf32, #tpu.memory_space<vmem>>, %arg5: memref<1x32xf32, #tpu.memory_space<vmem>>, %arg6: memref<128x64xf32, #tpu.memory_space<vmem>>, %arg7: memref<1x64xf32, #tpu.memory_space<vmem>>, %arg8: memref<64x128xf32, #tpu.memory_space<vmem>>, %arg9: memref<1x128xf32, #tpu.memory_space<vmem>>, %arg10: memref<8x128xf32, #tpu.memory_space<vmem>>, %arg11: memref<48x96xf32, #tpu.memory_space<vmem>>, %arg12: memref<32x256xf32, #tpu.memory_space<vmem>>, %arg13: memref<8x128xf32, #tpu.memory_space<vmem>>) attributes {dimension_semantics = [#tpu.dimension_semantics<parallel>], iteration_bounds = array<i64: 1>, scalar_prefetch = 0 : i64, scratch_operands = 3 : i64, tpu.core_type = #tpu.core_type<tc>, window_params = [{transform_indices = @transform_0, window_bounds = array<i64: 36, 8, 256>}, {pipeline_mode = #tpu.pipeline_mode<synchronous>, transform_indices = @transform_1, window_bounds = array<i64: 256, 16>}, {pipeline_mode = #tpu.pipeline_mode<synchronous>, transform_indices = @transform_2, window_bounds = array<i64: 1, 16>}, {pipeline_mode = #tpu.pipeline_mode<synchronous>, transform_indices = @transform_3, window_bounds = array<i64: 256, 32>}, {pipeline_mode = #tpu.pipeline_mode<synchronous>, transform_indices = @transform_4, window_bounds = array<i64: 1, 32>}, {pipeline_mode = #tpu.pipeline_mode<synchronous>, transform_indices = @transform_5, window_bounds = array<i64: 128, 64>}, {pipeline_mode = #tpu.pipeline_mode<synchronous>, transform_indices = @transform_6, window_bounds = array<i64: 1, 64>}, {pipeline_mode = #tpu.pipeline_mode<synchronous>, transform_indices = @transform_7, window_bounds = array<i64: 64, 128>}, {pipeline_mode = #tpu.pipeline_mode<synchronous>, transform_indices = @transform_8, window_bounds = array<i64: 1, 128>}, {transform_indices = @transform_9, window_bounds = array<i64: 8, 128>}]} {
    %c0 = arith.constant 0 : index
    %c0_0 = arith.constant 0 : index
    %0 = vector.load %arg2[%c0, %c0_0] : memref<256x16xf32, #tpu.memory_space<vmem>>, vector<256x16xf32>
    %c0_1 = arith.constant 0 : index
    %c0_2 = arith.constant 0 : index
    %1 = vector.load %arg3[%c0_1, %c0_2] : memref<1x16xf32, #tpu.memory_space<vmem>>, vector<1x16xf32>
    %c0_3 = arith.constant 0 : index
    %c0_4 = arith.constant 0 : index
    %c0_5 = arith.constant 0 : index
    %2 = vector.load %arg1[%c0_3, %c0_4, %c0_5] : memref<36x8x256xf32, #tpu.memory_space<vmem>>, vector<6x8x256xf32>
    %3 = vector.shape_cast %2 : vector<6x8x256xf32> to vector<48x256xf32>
    %cst = arith.constant dense<0.000000e+00> : vector<48x16xf32>
    %4 = tpu.matmul %3, %0, %cst {dimension_numbers = #tpu.dot_dimension_numbers<[1], [0], [0], [1], [0, 0, 1, 1], [], []>} : vector<48x256xf32>, vector<256x16xf32>, vector<48x16xf32> -> vector<48x16xf32>
    %5 = vector.broadcast %1 : vector<1x16xf32> to vector<48x16xf32>
    %6 = arith.addf %4, %5 : vector<48x16xf32>
    %cst_6 = arith.constant 0.000000e+00 : f32
    %7 = vector.broadcast %cst_6 : f32 to vector<48x16xf32>
    %8 = arith.maximumf %6, %7 : vector<48x16xf32>
    %c0_7 = arith.constant 0 : index
    %c0_8 = arith.constant 0 : index
    %9 = vector.load %arg11[%c0_7, %c0_8] : memref<48x96xf32, #tpu.memory_space<vmem>>, vector<48x16xf32>
    tpu.vector_store %arg11[%c0_7, %c0_8], %8 {strides = array<i32>} : memref<48x96xf32, #tpu.memory_space<vmem>>, vector<48x16xf32>,
    %c6 = arith.constant 6 : index
    %c0_9 = arith.constant 0 : index
    %c0_10 = arith.constant 0 : index
    %10 = vector.load %arg1[%c6, %c0_9, %c0_10] : memref<36x8x256xf32, #tpu.memory_space<vmem>>, vector<6x8x256xf32>
    %11 = vector.shape_cast %10 : vector<6x8x256xf32> to vector<48x256xf32>
    %cst_11 = arith.constant dense<0.000000e+00> : vector<48x16xf32>
    %12 = tpu.matmul %11, %0, %cst_11 {dimension_numbers = #tpu.dot_dimension_numbers<[1], [0], [0], [1], [0, 0, 1, 1], [], []>} : vector<48x256xf32>, vector<256x16xf32>, vector<48x16xf32> -> vector<48x16xf32>
    %13 = vector.broadcast %1 : vector<1x16xf32> to vector<48x16xf32>
    %14 = arith.addf %12, %13 : vector<48x16xf32>
    %cst_12 = arith.constant 0.000000e+00 : f32
    %15 = vector.broadcast %cst_12 : f32 to vector<48x16xf32>
    %16 = arith.maximumf %14, %15 : vector<48x16xf32>
    %c0_13 = arith.constant 0 : index
    %c16 = arith.constant 16 : index
    %17 = vector.load %arg11[%c0_13, %c16] : memref<48x96xf32, #tpu.memory_space<vmem>>, vector<48x16xf32>
    tpu.vector_store %arg11[%c0_13, %c16], %16 {strides = array<i32>} : memref<48x96xf32, #tpu.memory_space<vmem>>, vector<48x16xf32>,
    %c12 = arith.constant 12 : index
    %c0_14 = arith.constant 0 : index
    %c0_15 = arith.constant 0 : index
    %18 = vector.load %arg1[%c12, %c0_14, %c0_15] : memref<36x8x256xf32, #tpu.memory_space<vmem>>, vector<6x8x256xf32>
    %19 = vector.shape_cast %18 : vector<6x8x256xf32> to vector<48x256xf32>
    %cst_16 = arith.constant dense<0.000000e+00> : vector<48x16xf32>
    %20 = tpu.matmul %19, %0, %cst_16 {dimension_numbers = #tpu.dot_dimension_numbers<[1], [0], [0], [1], [0, 0, 1, 1], [], []>} : vector<48x256xf32>, vector<256x16xf32>, vector<48x16xf32> -> vector<48x16xf32>
    %21 = vector.broadcast %1 : vector<1x16xf32> to vector<48x16xf32>
    %22 = arith.addf %20, %21 : vector<48x16xf32>
    %cst_17 = arith.constant 0.000000e+00 : f32
    %23 = vector.broadcast %cst_17 : f32 to vector<48x16xf32>
    %24 = arith.maximumf %22, %23 : vector<48x16xf32>
    %c0_18 = arith.constant 0 : index
    %c32 = arith.constant 32 : index
    %25 = vector.load %arg11[%c0_18, %c32] : memref<48x96xf32, #tpu.memory_space<vmem>>, vector<48x16xf32>
    tpu.vector_store %arg11[%c0_18, %c32], %24 {strides = array<i32>} : memref<48x96xf32, #tpu.memory_space<vmem>>, vector<48x16xf32>,
    %c18 = arith.constant 18 : index
    %c0_19 = arith.constant 0 : index
    %c0_20 = arith.constant 0 : index
    %26 = vector.load %arg1[%c18, %c0_19, %c0_20] : memref<36x8x256xf32, #tpu.memory_space<vmem>>, vector<6x8x256xf32>
    %27 = vector.shape_cast %26 : vector<6x8x256xf32> to vector<48x256xf32>
    %cst_21 = arith.constant dense<0.000000e+00> : vector<48x16xf32>
    %28 = tpu.matmul %27, %0, %cst_21 {dimension_numbers = #tpu.dot_dimension_numbers<[1], [0], [0], [1], [0, 0, 1, 1], [], []>} : vector<48x256xf32>, vector<256x16xf32>, vector<48x16xf32> -> vector<48x16xf32>
    %29 = vector.broadcast %1 : vector<1x16xf32> to vector<48x16xf32>
    %30 = arith.addf %28, %29 : vector<48x16xf32>
    %cst_22 = arith.constant 0.000000e+00 : f32
    %31 = vector.broadcast %cst_22 : f32 to vector<48x16xf32>
    %32 = arith.maximumf %30, %31 : vector<48x16xf32>
    %c0_23 = arith.constant 0 : index
    %c48 = arith.constant 48 : index
    %33 = vector.load %arg11[%c0_23, %c48] : memref<48x96xf32, #tpu.memory_space<vmem>>, vector<48x16xf32>
    tpu.vector_store %arg11[%c0_23, %c48], %32 {strides = array<i32>} : memref<48x96xf32, #tpu.memory_space<vmem>>, vector<48x16xf32>,
    %c24 = arith.constant 24 : index
    %c0_24 = arith.constant 0 : index
    %c0_25 = arith.constant 0 : index
    %34 = vector.load %arg1[%c24, %c0_24, %c0_25] : memref<36x8x256xf32, #tpu.memory_space<vmem>>, vector<6x8x256xf32>
    %35 = vector.shape_cast %34 : vector<6x8x256xf32> to vector<48x256xf32>
    %cst_26 = arith.constant dense<0.000000e+00> : vector<48x16xf32>
    %36 = tpu.matmul %35, %0, %cst_26 {dimension_numbers = #tpu.dot_dimension_numbers<[1], [0], [0], [1], [0, 0, 1, 1], [], []>} : vector<48x256xf32>, vector<256x16xf32>, vector<48x16xf32> -> vector<48x16xf32>
    %37 = vector.broadcast %1 : vector<1x16xf32> to vector<48x16xf32>
    %38 = arith.addf %36, %37 : vector<48x16xf32>
    %cst_27 = arith.constant 0.000000e+00 : f32
    %39 = vector.broadcast %cst_27 : f32 to vector<48x16xf32>
    %40 = arith.maximumf %38, %39 : vector<48x16xf32>
    %c0_28 = arith.constant 0 : index
    %c64 = arith.constant 64 : index
    %41 = vector.load %arg11[%c0_28, %c64] : memref<48x96xf32, #tpu.memory_space<vmem>>, vector<48x16xf32>
    tpu.vector_store %arg11[%c0_28, %c64], %40 {strides = array<i32>} : memref<48x96xf32, #tpu.memory_space<vmem>>, vector<48x16xf32>,
    %c30 = arith.constant 30 : index
    %c0_29 = arith.constant 0 : index
    %c0_30 = arith.constant 0 : index
    %42 = vector.load %arg1[%c30, %c0_29, %c0_30] : memref<36x8x256xf32, #tpu.memory_space<vmem>>, vector<6x8x256xf32>
    %43 = vector.shape_cast %42 : vector<6x8x256xf32> to vector<48x256xf32>
    %cst_31 = arith.constant dense<0.000000e+00> : vector<48x16xf32>
    %44 = tpu.matmul %43, %0, %cst_31 {dimension_numbers = #tpu.dot_dimension_numbers<[1], [0], [0], [1], [0, 0, 1, 1], [], []>} : vector<48x256xf32>, vector<256x16xf32>, vector<48x16xf32> -> vector<48x16xf32>
    %45 = vector.broadcast %1 : vector<1x16xf32> to vector<48x16xf32>
    %46 = arith.addf %44, %45 : vector<48x16xf32>
    %cst_32 = arith.constant 0.000000e+00 : f32
    %47 = vector.broadcast %cst_32 : f32 to vector<48x16xf32>
    %48 = arith.maximumf %46, %47 : vector<48x16xf32>
    %c0_33 = arith.constant 0 : index
    %c80 = arith.constant 80 : index
    %49 = vector.load %arg11[%c0_33, %c80] : memref<48x96xf32, #tpu.memory_space<vmem>>, vector<48x16xf32>
    tpu.vector_store %arg11[%c0_33, %c80], %48 {strides = array<i32>} : memref<48x96xf32, #tpu.memory_space<vmem>>, vector<48x16xf32>,
    %c0_34 = arith.constant 0 : index
    %c0_35 = arith.constant 0 : index
    %50 = vector.load %arg11[%c0_34, %c0_35] : memref<48x96xf32, #tpu.memory_space<vmem>>, vector<8x64xf32>
    %c0_36 = arith.constant 0 : index
    %c0_37 = arith.constant 0 : index
    %51 = vector.load %arg12[%c0_36, %c0_37] : memref<32x256xf32, #tpu.memory_space<vmem>>, vector<8x64xf32>
    tpu.vector_store %arg12[%c0_36, %c0_37], %50 {strides = array<i32>} : memref<32x256xf32, #tpu.memory_space<vmem>>, vector<8x64xf32>,
    %c8 = arith.constant 8 : index
    %c0_38 = arith.constant 0 : index
    %52 = vector.load %arg11[%c8, %c0_38] : memref<48x96xf32, #tpu.memory_space<vmem>>, vector<8x64xf32>
    %c0_39 = arith.constant 0 : index
    %c64_40 = arith.constant 64 : index
    %53 = vector.load %arg12[%c0_39, %c64_40] : memref<32x256xf32, #tpu.memory_space<vmem>>, vector<8x64xf32>
    tpu.vector_store %arg12[%c0_39, %c64_40], %52 {strides = array<i32>} : memref<32x256xf32, #tpu.memory_space<vmem>>, vector<8x64xf32>,
    %c16_41 = arith.constant 16 : index
    %c0_42 = arith.constant 0 : index
    %54 = vector.load %arg11[%c16_41, %c0_42] : memref<48x96xf32, #tpu.memory_space<vmem>>, vector<8x64xf32>
    %c0_43 = arith.constant 0 : index
    %c128 = arith.constant 128 : index
    %55 = vector.load %arg12[%c0_43, %c128] : memref<32x256xf32, #tpu.memory_space<vmem>>, vector<8x64xf32>
    tpu.vector_store %arg12[%c0_43, %c128], %54 {strides = array<i32>} : memref<32x256xf32, #tpu.memory_space<vmem>>, vector<8x64xf32>,
    %c24_44 = arith.constant 24 : index
    %c0_45 = arith.constant 0 : index
    %56 = vector.load %arg11[%c24_44, %c0_45] : memref<48x96xf32, #tpu.memory_space<vmem>>, vector<8x64xf32>
    %c0_46 = arith.constant 0 : index
    %c192 = arith.constant 192 : index
    %57 = vector.load %arg12[%c0_46, %c192] : memref<32x256xf32, #tpu.memory_space<vmem>>, vector<8x64xf32>
    tpu.vector_store %arg12[%c0_46, %c192], %56 {strides = array<i32>} : memref<32x256xf32, #tpu.memory_space<vmem>>, vector<8x64xf32>,
    %c0_47 = arith.constant 0 : index
    %c32_48 = arith.constant 32 : index
    %58 = vector.load %arg11[%c0_47, %c32_48] : memref<48x96xf32, #tpu.memory_space<vmem>>, vector<8x64xf32>
    %c8_49 = arith.constant 8 : index
    %c0_50 = arith.constant 0 : index
    %59 = vector.load %arg12[%c8_49, %c0_50] : memref<32x256xf32, #tpu.memory_space<vmem>>, vector<8x64xf32>
    tpu.vector_store %arg12[%c8_49, %c0_50], %58 {strides = array<i32>} : memref<32x256xf32, #tpu.memory_space<vmem>>, vector<8x64xf32>,
    %c8_51 = arith.constant 8 : index
    %c32_52 = arith.constant 32 : index
    %60 = vector.load %arg11[%c8_51, %c32_52] : memref<48x96xf32, #tpu.memory_space<vmem>>, vector<8x64xf32>
    %c8_53 = arith.constant 8 : index
    %c64_54 = arith.constant 64 : index
    %61 = vector.load %arg12[%c8_53, %c64_54] : memref<32x256xf32, #tpu.memory_space<vmem>>, vector<8x64xf32>
    tpu.vector_store %arg12[%c8_53, %c64_54], %60 {strides = array<i32>} : memref<32x256xf32, #tpu.memory_space<vmem>>, vector<8x64xf32>,
    %c16_55 = arith.constant 16 : index
    %c32_56 = arith.constant 32 : index
    %62 = vector.load %arg11[%c16_55, %c32_56] : memref<48x96xf32, #tpu.memory_space<vmem>>, vector<8x64xf32>
    %c8_57 = arith.constant 8 : index
    %c128_58 = arith.constant 128 : index
    %63 = vector.load %arg12[%c8_57, %c128_58] : memref<32x256xf32, #tpu.memory_space<vmem>>, vector<8x64xf32>
    tpu.vector_store %arg12[%c8_57, %c128_58], %62 {strides = array<i32>} : memref<32x256xf32, #tpu.memory_space<vmem>>, vector<8x64xf32>,
    %c24_59 = arith.constant 24 : index
    %c32_60 = arith.constant 32 : index
    %64 = vector.load %arg11[%c24_59, %c32_60] : memref<48x96xf32, #tpu.memory_space<vmem>>, vector<8x64xf32>
    %c8_61 = arith.constant 8 : index
    %c192_62 = arith.constant 192 : index
    %65 = vector.load %arg12[%c8_61, %c192_62] : memref<32x256xf32, #tpu.memory_space<vmem>>, vector<8x64xf32>
    tpu.vector_store %arg12[%c8_61, %c192_62], %64 {strides = array<i32>} : memref<32x256xf32, #tpu.memory_space<vmem>>, vector<8x64xf32>,
    %c16_63 = arith.constant 16 : index
    %c0_64 = arith.constant 0 : index
    %66 = vector.load %arg11[%c16_63, %c0_64] : memref<48x96xf32, #tpu.memory_space<vmem>>, vector<8x64xf32>
    %c16_65 = arith.constant 16 : index
    %c0_66 = arith.constant 0 : index
    %67 = vector.load %arg12[%c16_65, %c0_66] : memref<32x256xf32, #tpu.memory_space<vmem>>, vector<8x64xf32>
    tpu.vector_store %arg12[%c16_65, %c0_66], %66 {strides = array<i32>} : memref<32x256xf32, #tpu.memory_space<vmem>>, vector<8x64xf32>,
    %c24_67 = arith.constant 24 : index
    %c0_68 = arith.constant 0 : index
    %68 = vector.load %arg11[%c24_67, %c0_68] : memref<48x96xf32, #tpu.memory_space<vmem>>, vector<8x64xf32>
    %c16_69 = arith.constant 16 : index
    %c64_70 = arith.constant 64 : index
    %69 = vector.load %arg12[%c16_69, %c64_70] : memref<32x256xf32, #tpu.memory_space<vmem>>, vector<8x64xf32>
    tpu.vector_store %arg12[%c16_69, %c64_70], %68 {strides = array<i32>} : memref<32x256xf32, #tpu.memory_space<vmem>>, vector<8x64xf32>,
    %c32_71 = arith.constant 32 : index
    %c0_72 = arith.constant 0 : index
    %70 = vector.load %arg11[%c32_71, %c0_72] : memref<48x96xf32, #tpu.memory_space<vmem>>, vector<8x64xf32>
    %c16_73 = arith.constant 16 : index
    %c128_74 = arith.constant 128 : index
    %71 = vector.load %arg12[%c16_73, %c128_74] : memref<32x256xf32, #tpu.memory_space<vmem>>, vector<8x64xf32>
    tpu.vector_store %arg12[%c16_73, %c128_74], %70 {strides = array<i32>} : memref<32x256xf32, #tpu.memory_space<vmem>>, vector<8x64xf32>,
    %c40 = arith.constant 40 : index
    %c0_75 = arith.constant 0 : index
    %72 = vector.load %arg11[%c40, %c0_75] : memref<48x96xf32, #tpu.memory_space<vmem>>, vector<8x64xf32>
    %c16_76 = arith.constant 16 : index
    %c192_77 = arith.constant 192 : index
    %73 = vector.load %arg12[%c16_76, %c192_77] : memref<32x256xf32, #tpu.memory_space<vmem>>, vector<8x64xf32>
    tpu.vector_store %arg12[%c16_76, %c192_77], %72 {strides = array<i32>} : memref<32x256xf32, #tpu.memory_space<vmem>>, vector<8x64xf32>,
    %c16_78 = arith.constant 16 : index
    %c32_79 = arith.constant 32 : index
    %74 = vector.load %arg11[%c16_78, %c32_79] : memref<48x96xf32, #tpu.memory_space<vmem>>, vector<8x64xf32>
    %c24_80 = arith.constant 24 : index
    %c0_81 = arith.constant 0 : index
    %75 = vector.load %arg12[%c24_80, %c0_81] : memref<32x256xf32, #tpu.memory_space<vmem>>, vector<8x64xf32>
    tpu.vector_store %arg12[%c24_80, %c0_81], %74 {strides = array<i32>} : memref<32x256xf32, #tpu.memory_space<vmem>>, vector<8x64xf32>,
    %c24_82 = arith.constant 24 : index
    %c32_83 = arith.constant 32 : index
    %76 = vector.load %arg11[%c24_82, %c32_83] : memref<48x96xf32, #tpu.memory_space<vmem>>, vector<8x64xf32>
    %c24_84 = arith.constant 24 : index
    %c64_85 = arith.constant 64 : index
    %77 = vector.load %arg12[%c24_84, %c64_85] : memref<32x256xf32, #tpu.memory_space<vmem>>, vector<8x64xf32>
    tpu.vector_store %arg12[%c24_84, %c64_85], %76 {strides = array<i32>} : memref<32x256xf32, #tpu.memory_space<vmem>>, vector<8x64xf32>,
    %c32_86 = arith.constant 32 : index
    %c32_87 = arith.constant 32 : index
    %78 = vector.load %arg11[%c32_86, %c32_87] : memref<48x96xf32, #tpu.memory_space<vmem>>, vector<8x64xf32>
    %c24_88 = arith.constant 24 : index
    %c128_89 = arith.constant 128 : index
    %79 = vector.load %arg12[%c24_88, %c128_89] : memref<32x256xf32, #tpu.memory_space<vmem>>, vector<8x64xf32>
    tpu.vector_store %arg12[%c24_88, %c128_89], %78 {strides = array<i32>} : memref<32x256xf32, #tpu.memory_space<vmem>>, vector<8x64xf32>,
    %c40_90 = arith.constant 40 : index
    %c32_91 = arith.constant 32 : index
    %80 = vector.load %arg11[%c40_90, %c32_91] : memref<48x96xf32, #tpu.memory_space<vmem>>, vector<8x64xf32>
    %c24_92 = arith.constant 24 : index
    %c192_93 = arith.constant 192 : index
    %81 = vector.load %arg12[%c24_92, %c192_93] : memref<32x256xf32, #tpu.memory_space<vmem>>, vector<8x64xf32>
    tpu.vector_store %arg12[%c24_92, %c192_93], %80 {strides = array<i32>} : memref<32x256xf32, #tpu.memory_space<vmem>>, vector<8x64xf32>,
    %c0_94 = arith.constant 0 : index
    %c0_95 = arith.constant 0 : index
    %82 = vector.load %arg12[%c0_94, %c0_95] : memref<32x256xf32, #tpu.memory_space<vmem>>, vector<32x256xf32>
    %c0_96 = arith.constant 0 : index
    %c0_97 = arith.constant 0 : index
    %83 = vector.load %arg4[%c0_96, %c0_97] : memref<256x32xf32, #tpu.memory_space<vmem>>, vector<256x32xf32>
    %cst_98 = arith.constant dense<0.000000e+00> : vector<32x32xf32>
    %84 = tpu.matmul %82, %83, %cst_98 {dimension_numbers = #tpu.dot_dimension_numbers<[1], [0], [0], [1], [0, 0, 1, 1], [], []>} : vector<32x256xf32>, vector<256x32xf32>, vector<32x32xf32> -> vector<32x32xf32>
    %c0_99 = arith.constant 0 : index
    %c0_100 = arith.constant 0 : index
    %85 = vector.load %arg5[%c0_99, %c0_100] : memref<1x32xf32, #tpu.memory_space<vmem>>, vector<1x32xf32>
    %86 = vector.broadcast %85 : vector<1x32xf32> to vector<32x32xf32>
    %87 = arith.addf %84, %86 : vector<32x32xf32>
    %cst_101 = arith.constant 0.000000e+00 : f32
    %88 = vector.broadcast %cst_101 : f32 to vector<32x32xf32>
    %89 = arith.maximumf %87, %88 : vector<32x32xf32>
    %90 = vector.extract_strided_slice %89 {offsets = [0, 0], sizes = [8, 32], strides = [1, 1]} : vector<32x32xf32> to vector<8x32xf32>
    %c0_102 = arith.constant 0 : index
    %c0_103 = arith.constant 0 : index
    %91 = vector.load %arg13[%c0_102, %c0_103] : memref<8x128xf32, #tpu.memory_space<vmem>>, vector<8x32xf32>
    tpu.vector_store %arg13[%c0_102, %c0_103], %90 {strides = array<i32>} : memref<8x128xf32, #tpu.memory_space<vmem>>, vector<8x32xf32>,
    %92 = vector.extract_strided_slice %89 {offsets = [8, 0], sizes = [8, 32], strides = [1, 1]} : vector<32x32xf32> to vector<8x32xf32>
    %c0_104 = arith.constant 0 : index
    %c32_105 = arith.constant 32 : index
    %93 = vector.load %arg13[%c0_104, %c32_105] : memref<8x128xf32, #tpu.memory_space<vmem>>, vector<8x32xf32>
    tpu.vector_store %arg13[%c0_104, %c32_105], %92 {strides = array<i32>} : memref<8x128xf32, #tpu.memory_space<vmem>>, vector<8x32xf32>,
    %94 = vector.extract_strided_slice %89 {offsets = [16, 0], sizes = [8, 32], strides = [1, 1]} : vector<32x32xf32> to vector<8x32xf32>
    %c0_106 = arith.constant 0 : index
    %c64_107 = arith.constant 64 : index
    %95 = vector.load %arg13[%c0_106, %c64_107] : memref<8x128xf32, #tpu.memory_space<vmem>>, vector<8x32xf32>
    tpu.vector_store %arg13[%c0_106, %c64_107], %94 {strides = array<i32>} : memref<8x128xf32, #tpu.memory_space<vmem>>, vector<8x32xf32>,
    %96 = vector.extract_strided_slice %89 {offsets = [24, 0], sizes = [8, 32], strides = [1, 1]} : vector<32x32xf32> to vector<8x32xf32>
    %c0_108 = arith.constant 0 : index
    %c96 = arith.constant 96 : index
    %97 = vector.load %arg13[%c0_108, %c96] : memref<8x128xf32, #tpu.memory_space<vmem>>, vector<8x32xf32>
    tpu.vector_store %arg13[%c0_108, %c96], %96 {strides = array<i32>} : memref<8x128xf32, #tpu.memory_space<vmem>>, vector<8x32xf32>,
    %c0_109 = arith.constant 0 : index
    %c0_110 = arith.constant 0 : index
    %98 = vector.load %arg13[%c0_109, %c0_110] : memref<8x128xf32, #tpu.memory_space<vmem>>, vector<8x128xf32>
    %c0_111 = arith.constant 0 : index
    %c0_112 = arith.constant 0 : index
    %99 = vector.load %arg6[%c0_111, %c0_112] : memref<128x64xf32, #tpu.memory_space<vmem>>, vector<128x64xf32>
    %cst_113 = arith.constant dense<0.000000e+00> : vector<8x64xf32>
    %100 = tpu.matmul %98, %99, %cst_113 {dimension_numbers = #tpu.dot_dimension_numbers<[1], [0], [0], [1], [0, 0, 1, 1], [], []>} : vector<8x128xf32>, vector<128x64xf32>, vector<8x64xf32> -> vector<8x64xf32>
    %c0_114 = arith.constant 0 : index
    %c0_115 = arith.constant 0 : index
    %101 = vector.load %arg7[%c0_114, %c0_115] : memref<1x64xf32, #tpu.memory_space<vmem>>, vector<1x64xf32>
    %102 = vector.broadcast %101 : vector<1x64xf32> to vector<8x64xf32>
    %103 = arith.addf %100, %102 : vector<8x64xf32>
    %cst_116 = arith.constant 0.000000e+00 : f32
    %104 = vector.broadcast %cst_116 : f32 to vector<8x64xf32>
    %105 = arith.maximumf %103, %104 : vector<8x64xf32>
    %c0_117 = arith.constant 0 : index
    %c0_118 = arith.constant 0 : index
    %106 = vector.load %arg8[%c0_117, %c0_118] : memref<64x128xf32, #tpu.memory_space<vmem>>, vector<64x128xf32>
    %cst_119 = arith.constant dense<0.000000e+00> : vector<8x128xf32>
    %107 = tpu.matmul %105, %106, %cst_119 {dimension_numbers = #tpu.dot_dimension_numbers<[1], [0], [0], [1], [0, 0, 1, 1], [], []>} : vector<8x64xf32>, vector<64x128xf32>, vector<8x128xf32> -> vector<8x128xf32>
    %c0_120 = arith.constant 0 : index
    %c0_121 = arith.constant 0 : index
    %108 = vector.load %arg9[%c0_120, %c0_121] : memref<1x128xf32, #tpu.memory_space<vmem>>, vector<1x128xf32>
    %109 = vector.broadcast %108 : vector<1x128xf32> to vector<8x128xf32>
    %110 = arith.addf %107, %109 : vector<8x128xf32>
    %111 = math.tanh %110 : vector<8x128xf32>
    %c0_122 = arith.constant 0 : index
    %c0_123 = arith.constant 0 : index
    %112 = vector.load %arg10[%c0_122, %c0_123] : memref<8x128xf32, #tpu.memory_space<vmem>>, vector<8x128xf32>
    tpu.vector_store %arg10[%c0_122, %c0_123], %111 {strides = array<i32>} : memref<8x128xf32, #tpu.memory_space<vmem>>, vector<8x128xf32>,
    return
  }
  func.func @transform_0(%arg0: i32) -> (i32, i32, i32) {
    %c0_i32 = arith.constant 0 : i32
    %c0_i32_0 = arith.constant 0 : i32
    %c0_i32_1 = arith.constant 0 : i32
    return %c0_i32, %arg0, %c0_i32_0 : i32, i32, i32
  }
  func.func @transform_1(%arg0: i32) -> (i32, i32) {
    %c0_i32 = arith.constant 0 : i32
    %c0_i32_0 = arith.constant 0 : i32
    %c0_i32_1 = arith.constant 0 : i32
    return %c0_i32, %c0_i32_0 : i32, i32
  }
  func.func @transform_2(%arg0: i32) -> (i32, i32) {
    %c0_i32 = arith.constant 0 : i32
    %c0_i32_0 = arith.constant 0 : i32
    %c0_i32_1 = arith.constant 0 : i32
    return %c0_i32, %c0_i32_0 : i32, i32
  }
  func.func @transform_3(%arg0: i32) -> (i32, i32) {
    %c0_i32 = arith.constant 0 : i32
    %c0_i32_0 = arith.constant 0 : i32
    %c0_i32_1 = arith.constant 0 : i32
    return %c0_i32, %c0_i32_0 : i32, i32
  }
  func.func @transform_4(%arg0: i32) -> (i32, i32) {
    %c0_i32 = arith.constant 0 : i32
    %c0_i32_0 = arith.constant 0 : i32
    %c0_i32_1 = arith.constant 0 : i32
    return %c0_i32, %c0_i32_0 : i32, i32
  }
  func.func @transform_5(%arg0: i32) -> (i32, i32) {
    %c0_i32 = arith.constant 0 : i32
    %c0_i32_0 = arith.constant 0 : i32
    %c0_i32_1 = arith.constant 0 : i32
    return %c0_i32, %c0_i32_0 : i32, i32
  }
  func.func @transform_6(%arg0: i32) -> (i32, i32) {
    %c0_i32 = arith.constant 0 : i32
    %c0_i32_0 = arith.constant 0 : i32
    %c0_i32_1 = arith.constant 0 : i32
    return %c0_i32, %c0_i32_0 : i32, i32
  }
  func.func @transform_7(%arg0: i32) -> (i32, i32) {
    %c0_i32 = arith.constant 0 : i32
    %c0_i32_0 = arith.constant 0 : i32
    %c0_i32_1 = arith.constant 0 : i32
    return %c0_i32, %c0_i32_0 : i32, i32
  }
  func.func @transform_8(%arg0: i32) -> (i32, i32) {
    %c0_i32 = arith.constant 0 : i32
    %c0_i32_0 = arith.constant 0 : i32
    %c0_i32_1 = arith.constant 0 : i32
    return %c0_i32, %c0_i32_0 : i32, i32
  }
  func.func @transform_9(%arg0: i32) -> (i32, i32) {
    %c0_i32 = arith.constant 0 : i32
    %c0_i32_0 = arith.constant 0 : i32
    return %arg0, %c0_i32 : i32, i32
  }
}

</mosaic_0001>

<llo_original>
// kernel: actor_forward.1
$region0: #{actor_forward.1}
  #allocation0 [shape = 'u32[]', space=smem, size = 0x4, offset = 0x4, fixed_abs, tag = 'smem constant byte address 0x4 - core index']
  #allocation1 [shape = 'u32[144,128]{1,0:T(1,128)}', space=vmem, size = 0x12000, scoped, tag = 'internal scratch']
  #allocation2 [shape = 'f32[48,96]{1,0:T(8,128)}', space=vmem, size = 0x6000, scoped, tag = 'scratch operand']
  #allocation3 [shape = 'f32[32,256]{1,0:T(8,128)}', space=vmem, size = 0x8000, scoped, tag = 'scratch operand']
  #allocation4 [shape = 'f32[8,128]{1,0:T(8,128)}', space=vmem, size = 0x1000, scoped, tag = 'scratch operand']
  %s0 = inlined_call_operand.vmem [shape: f32[36,8,256], index: 0, kind: input, shape index: {}]
  %s1 = inlined_call_operand.vmem [shape: f32[256,16], index: 1, kind: input, shape index: {}]
  %s2 = inlined_call_operand.vmem [shape: f32[1,16], index: 2, kind: input, shape index: {}]
  %s3 = inlined_call_operand.vmem [shape: f32[256,32], index: 3, kind: input, shape index: {}]
  %s4 = inlined_call_operand.vmem [shape: f32[1,32], index: 4, kind: input, shape index: {}]
  %s5 = inlined_call_operand.vmem [shape: f32[128,64], index: 5, kind: input, shape index: {}]
  %s6 = inlined_call_operand.vmem [shape: f32[1,64], index: 6, kind: input, shape index: {}]
  %s7 = inlined_call_operand.vmem [shape: f32[64,128], index: 7, kind: input, shape index: {}]
  %s8 = inlined_call_operand.vmem [shape: f32[1,128], index: 8, kind: input, shape index: {}]
  %s9 = inlined_call_operand.vmem [shape: f32[8,128], index: 9, kind: output, shape index: {}]
  %s10 = sld [smem:[#allocation0]]
  $region46: #{actor_forward.1} parent=0
    _
  %s12 = ssub.s32 1, %s10
  %s13 = scalar_select 0, %s12, %s10
  // Predicated region
  $region2: #{actor_forward.1} parent=0 // pred_check
    _
  $region3: #{actor_forward.1} parent=0 // pred_check_branch
    %15 = sbr.rel (0) target = $region5
  $region4: #{actor_forward.1} parent=0 // pred_region
    _
  $region5: #{actor_forward.1} parent=0 // pred_fallthru
    _
  // Predicated region
  $region6: #{actor_forward.1} parent=0 // pred_check
    _
  $region7: #{actor_forward.1} parent=0 // pred_check_branch
    %17 = sbr.rel (0) target = $region9
  $region8: #{actor_forward.1} parent=0 // pred_region
    _
  $region9: #{actor_forward.1} parent=0 // pred_fallthru
    _
  // Predicated region
  $region10: #{actor_forward.1} parent=0 // pred_check
    _
  $region11: #{actor_forward.1} parent=0 // pred_check_branch
    %19 = sbr.rel (0) target = $region13
  $region12: #{actor_forward.1} parent=0 // pred_region
    _
  $region13: #{actor_forward.1} parent=0 // pred_fallthru
    _
  // Predicated region
  $region14: #{actor_forward.1} parent=0 // pred_check
    _
  $region15: #{actor_forward.1} parent=0 // pred_check_branch
    %21 = sbr.rel (0) target = $region17
  $region16: #{actor_forward.1} parent=0 // pred_region
    _
  $region17: #{actor_forward.1} parent=0 // pred_fallthru
    _
  // Predicated region
  $region18: #{actor_forward.1} parent=0 // pred_check
    _
  $region19: #{actor_forward.1} parent=0 // pred_check_branch
    %23 = sbr.rel (0) target = $region21
  $region20: #{actor_forward.1} parent=0 // pred_region
    _
  $region21: #{actor_forward.1} parent=0 // pred_fallthru
    _
  // Predicated region
  $region22: #{actor_forward.1} parent=0 // pred_check
    _
  $region23: #{actor_forward.1} parent=0 // pred_check_branch
    %25 = sbr.rel (0) target = $region25
  $region24: #{actor_forward.1} parent=0 // pred_region
    _
  $region25: #{actor_forward.1} parent=0 // pred_fallthru
    _
  // Predicated region
  $region26: #{actor_forward.1} parent=0 // pred_check
    _
  $region27: #{actor_forward.1} parent=0 // pred_check_branch
    %27 = sbr.rel (0) target = $region29
  $region28: #{actor_forward.1} parent=0 // pred_region
    _
  $region29: #{actor_forward.1} parent=0 // pred_fallthru
    _
  // Predicated region
  $region30: #{actor_forward.1} parent=0 // pred_check
    _
  $region31: #{actor_forward.1} parent=0 // pred_check_branch
    %29 = sbr.rel (0) target = $region33
  $region32: #{actor_forward.1} parent=0 // pred_region
    _
  $region33: #{actor_forward.1} parent=0 // pred_fallthru
    _
  // Predicated region
  $region34: #{actor_forward.1} parent=0 // pred_check
    _
  $region35: #{actor_forward.1} parent=0 // pred_check_branch
    %31 = sbr.rel (0) target = $region37
  $region36: #{actor_forward.1} parent=0 // pred_region
    _
  $region37: #{actor_forward.1} parent=0 // pred_fallthru
    _
  %v32 = vld [vmem:[%s1] sm:$0xff]
  %v33 = vld [vmem:[%s1 + $0x8] sm:$0xff]
  %v34 = vld [vmem:[%s1 + $0x10] sm:$0xff]
  %v35 = vld [vmem:[%s1 + $0x18] sm:$0xff]
  %v36 = vld [vmem:[%s1 + $0x20] sm:$0xff]
  %v37 = vld [vmem:[%s1 + $0x28] sm:$0xff]
  %v38 = vld [vmem:[%s1 + $0x30] sm:$0xff]
  %v39 = vld [vmem:[%s1 + $0x38] sm:$0xff]
  %v40 = vld [vmem:[%s1 + $0x40] sm:$0xff]
  %v41 = vld [vmem:[%s1 + $0x48] sm:$0xff]
  %v42 = vld [vmem:[%s1 + $0x50] sm:$0xff]
  %v43 = vld [vmem:[%s1 + $0x58] sm:$0xff]
  %v44 = vld [vmem:[%s1 + $0x60] sm:$0xff]
  %v45 = vld [vmem:[%s1 + $0x68] sm:$0xff]
  %v46 = vld [vmem:[%s1 + $0x70] sm:$0xff]
  %v47 = vld [vmem:[%s1 + $0x78] sm:$0xff]
  %v48 = vld [vmem:[%s1 + $0x80] sm:$0xff]
  %v49 = vld [vmem:[%s1 + $0x88] sm:$0xff]
  %v50 = vld [vmem:[%s1 + $0x90] sm:$0xff]
  %v51 = vld [vmem:[%s1 + $0x98] sm:$0xff]
  %v52 = vld [vmem:[%s1 + $0xa0] sm:$0xff]
  %v53 = vld [vmem:[%s1 + $0xa8] sm:$0xff]
  %v54 = vld [vmem:[%s1 + $0xb0] sm:$0xff]
  %v55 = vld [vmem:[%s1 + $0xb8] sm:$0xff]
  %v56 = vld [vmem:[%s1 + $0xc0] sm:$0xff]
  %v57 = vld [vmem:[%s1 + $0xc8] sm:$0xff]
  %v58 = vld [vmem:[%s1 + $0xd0] sm:$0xff]
  %v59 = vld [vmem:[%s1 + $0xd8] sm:$0xff]
  %v60 = vld [vmem:[%s1 + $0xe0] sm:$0xff]
  %v61 = vld [vmem:[%s1 + $0xe8] sm:$0xff]
  %v62 = vld [vmem:[%s1 + $0xf0] sm:$0xff]
  %v63 = vld [vmem:[%s1 + $0xf8] sm:$0xff]
  %v64 = vld [vmem:[%s2] sm:$0x1]
  %v65 = vld [vmem:[%s0] sm:$0xff]
  %v66 = vld [vmem:[%s0 + $0x8] sm:$0xff]
  %v67 = vld [vmem:[%s0 + $0x10] sm:$0xff]
  %v68 = vld [vmem:[%s0 + $0x18] sm:$0xff]
  %v69 = vld [vmem:[%s0 + $0x20] sm:$0xff]
  %v70 = vld [vmem:[%s0 + $0x28] sm:$0xff]
  %v71 = vld [vmem:[%s0 + $0x30] sm:$0xff]
  %v72 = vld [vmem:[%s0 + $0x38] sm:$0xff]
  %v73 = vld [vmem:[%s0 + $0x40] sm:$0xff]
  %v74 = vld [vmem:[%s0 + $0x48] sm:$0xff]
  %v75 = vld [vmem:[%s0 + $0x50] sm:$0xff]
  %v76 = vld [vmem:[%s0 + $0x58] sm:$0xff]
  %v78 = vlaneseq
  %v79 = vshrl.u32 %v78, 7
  %v80 = vsub.s32 0, %v79
  %v81 = vrot.slane %v64, %v80
  %83 = vmatprep.subr.mxu0 0.0
  %84 = vmatpush1.msra.mxu0 %v32
  %85 = vmatprep.subr.mxu0 0.0
  %86 = vmatpush1.msra.mxu0 %v33
  %87 = vmatprep.subr.mxu0 0.0
  %88 = vmatpush1.msra.mxu0 %v34
  %89 = vmatprep.subr.mxu0 0.0
  %90 = vmatpush1.msra.mxu0 %v35
  %91 = vmatprep.subr.mxu0 0.0
  %92 = vmatpush1.msra.mxu0 %v36
  %93 = vmatprep.subr.mxu0 0.0
  %94 = vmatpush1.msra.mxu0 %v37
  %95 = vmatprep.subr.mxu0 0.0
  %96 = vmatpush1.msra.mxu0 %v38
  %97 = vmatprep.subr.mxu0 0.0
  %98 = vmatpush1.msra.mxu0 %v39
  %99 = vmatprep.subr.mxu0 0.0
  %100 = vmatpush1.msra.mxu0 %v40
  %101 = vmatprep.subr.mxu0 0.0
  %102 = vmatpush1.msra.mxu0 %v41
  %103 = vmatprep.subr.mxu0 0.0
  %104 = vmatpush1.msra.mxu0 %v42
  %105 = vmatprep.subr.mxu0 0.0
  %106 = vmatpush1.msra.mxu0 %v43
  %107 = vmatprep.subr.mxu0 0.0
  %108 = vmatpush1.msra.mxu0 %v44
  %109 = vmatprep.subr.mxu0 0.0
  %110 = vmatpush1.msra.mxu0 %v45
  %111 = vmatprep.subr.mxu0 0.0
  %112 = vmatpush1.msra.mxu0 %v46
  %113 = vmatprep.subr.mxu0 0.0
  %114 = vmatpush1.msra.mxu0 %v47
  %115 = vmatprep.subr.mxu0 0.0
  %116 = vmatpush1.msra.mxu0 %v48
  %117 = vmatprep.subr.mxu0 0.0
  %118 = vmatpush1.msra.mxu0 %v49
  %119 = vmatprep.subr.mxu0 0.0
  %120 = vmatpush1.msra.mxu0 %v50
  %121 = vmatprep.subr.mxu0 0.0
  %122 = vmatpush1.msra.mxu0 %v51
  %123 = vmatprep.subr.mxu0 0.0
  %124 = vmatpush1.msra.mxu0 %v52
  %125 = vmatprep.subr.mxu0 0.0
  %126 = vmatpush1.msra.mxu0 %v53
  %127 = vmatprep.subr.mxu0 0.0
  %128 = vmatpush1.msra.mxu0 %v54
  %129 = vmatprep.subr.mxu0 0.0
  %130 = vmatpush1.msra.mxu0 %v55
  %131 = vmatprep.subr.mxu0 0.0
  %132 = vmatpush1.msra.mxu0 %v56
  %133 = vmatprep.subr.mxu0 0.0
  %134 = vmatpush1.msra.mxu0 %v57
  %135 = vmatprep.subr.mxu0 0.0
  %136 = vmatpush1.msra.mxu0 %v58
  %137 = vmatprep.subr.mxu0 0.0
  %138 = vmatpush1.msra.mxu0 %v59
  %139 = vmatprep.subr.mxu0 0.0
  %140 = vmatpush1.msra.mxu0 %v60
  %141 = vmatprep.subr.mxu0 0.0
  %142 = vmatpush1.msra.mxu0 %v61
  %143 = vmatprep.subr.mxu0 0.0
  %144 = vmatpush1.msra.mxu0 %v62
  %145 = vmatprep.subr.mxu0 0.0
  %146 = vmatpush1.msra.mxu0 %v63
  %147 = vmatprep.mubr.f32.mxu0 %v66
  %148 = vmatmul.mubr.f32.gmra.mrb[0].mxu0 %v65
  %v149 = vpop.f32.mrb[0].mxu0
  %v150 = vadd.f32 %v81, %v149
  %v151 = vpop.f32.mrb[0].mxu0
  %152 = vmatprep.mubr.f32.mxu0 %v68
  %153 = vmatmul.mubr.f32.gmra.mrb[0].mxu0 %v67
  %v154 = vpop.f32.mrb[0].mxu0
  %v155 = vadd.f32 %v81, %v154
  %v156 = vpop.f32.mrb[0].mxu0
  %157 = vmatprep.mubr.f32.mxu0 %v70
  %158 = vmatmul.mubr.f32.gmra.mrb[0].mxu0 %v69
  %v159 = vpop.f32.mrb[0].mxu0
  %v160 = vadd.f32 %v81, %v159
  %v161 = vpop.f32.mrb[0].mxu0
  %162 = vmatprep.mubr.f32.mxu0 %v72
  %163 = vmatmul.mubr.f32.gmra.mrb[0].mxu0 %v71
  %v164 = vpop.f32.mrb[0].mxu0
  %v165 = vadd.f32 %v81, %v164
  %v166 = vpop.f32.mrb[0].mxu0
  %167 = vmatprep.mubr.f32.mxu0 %v74
  %168 = vmatmul.mubr.f32.gmra.mrb[0].mxu0 %v73
  %v169 = vpop.f32.mrb[0].mxu0
  %v170 = vadd.f32 %v81, %v169
  %v171 = vpop.f32.mrb[0].mxu0
  %172 = vmatprep.mubr.f32.mxu0 %v76
  %173 = vmatmul.mubr.f32.gmra.mrb[0].mxu0 %v75
  %v174 = vpop.f32.mrb[0].mxu0
  %v175 = vadd.f32 %v81, %v174
  %v176 = vpop.f32.mrb[0].mxu0
  %177 = vdwg.mxu0
  %v178 = vmax.f32 %v150, 0.0
  %v179 = vmax.f32 %v155, 0.0
  %v180 = vmax.f32 %v160, 0.0
  %v181 = vmax.f32 %v165, 0.0
  %v182 = vmax.f32 %v170, 0.0
  %v183 = vmax.f32 %v175, 0.0
  %vm184 = vcmask 130048
  %185 = vst.msk [vmem:[#allocation2] sm:$0xff] %vm184, %v178
  %186 = vst.msk [vmem:[#allocation2 + $0x8] sm:$0xff] %vm184, %v179
  %187 = vst.msk [vmem:[#allocation2 + $0x10] sm:$0xff] %vm184, %v180
  %188 = vst.msk [vmem:[#allocation2 + $0x18] sm:$0xff] %vm184, %v181
  %189 = vst.msk [vmem:[#allocation2 + $0x20] sm:$0xff] %vm184, %v182
  %190 = vst.msk [vmem:[#allocation2 + $0x28] sm:$0xff] %vm184, %v183
  %s191 = scalar_lea.vmem %s0, 96
  %v192 = vld [vmem:[%s191] sm:$0xff]
  %v193 = vld [vmem:[%s191 + $0x8] sm:$0xff]
  %v194 = vld [vmem:[%s191 + $0x10] sm:$0xff]
  %v195 = vld [vmem:[%s191 + $0x18] sm:$0xff]
  %v196 = vld [vmem:[%s191 + $0x20] sm:$0xff]
  %v197 = vld [vmem:[%s191 + $0x28] sm:$0xff]
  %v198 = vld [vmem:[%s191 + $0x30] sm:$0xff]
  %v199 = vld [vmem:[%s191 + $0x38] sm:$0xff]
  %v200 = vld [vmem:[%s191 + $0x40] sm:$0xff]
  %v201 = vld [vmem:[%s191 + $0x48] sm:$0xff]
  %v202 = vld [vmem:[%s191 + $0x50] sm:$0xff]
  %v203 = vld [vmem:[%s191 + $0x58] sm:$0xff]
  %204 = vmatprep.subr.mxu0 0.0
  %205 = vmatpush1.msra.mxu0 %v32
  %206 = vmatprep.subr.mxu0 0.0
  %207 = vmatpush1.msra.mxu0 %v33
  %208 = vmatprep.subr.mxu0 0.0
  %209 = vmatpush1.msra.mxu0 %v34
  %210 = vmatprep.subr.mxu0 0.0
  %211 = vmatpush1.msra.mxu0 %v35
  %212 = vmatprep.subr.mxu0 0.0
  %213 = vmatpush1.msra.mxu0 %v36
  %214 = vmatprep.subr.mxu0 0.0
  %215 = vmatpush1.msra.mxu0 %v37
  %216 = vmatprep.subr.mxu0 0.0
  %217 = vmatpush1.msra.mxu0 %v38
  %218 = vmatprep.subr.mxu0 0.0
  %219 = vmatpush1.msra.mxu0 %v39
  %220 = vmatprep.subr.mxu0 0.0
  %221 = vmatpush1.msra.mxu0 %v40
  %222 = vmatprep.subr.mxu0 0.0
  %223 = vmatpush1.msra.mxu0 %v41
  %224 = vmatprep.subr.mxu0 0.0
  %225 = vmatpush1.msra.mxu0 %v42
  %226 = vmatprep.subr.mxu0 0.0
  %227 = vmatpush1.msra.mxu0 %v43
  %228 = vmatprep.subr.mxu0 0.0
  %229 = vmatpush1.msra.mxu0 %v44
  %230 = vmatprep.subr.mxu0 0.0
  %231 = vmatpush1.msra.mxu0 %v45
  %232 = vmatprep.subr.mxu0 0.0
  %233 = vmatpush1.msra.mxu0 %v46
  %234 = vmatprep.subr.mxu0 0.0
  %235 = vmatpush1.msra.mxu0 %v47
  %236 = vmatprep.subr.mxu0 0.0
  %237 = vmatpush1.msra.mxu0 %v48
  %238 = vmatprep.subr.mxu0 0.0
  %239 = vmatpush1.msra.mxu0 %v49
  %240 = vmatprep.subr.mxu0 0.0
  %241 = vmatpush1.msra.mxu0 %v50
  %242 = vmatprep.subr.mxu0 0.0
  %243 = vmatpush1.msra.mxu0 %v51
  %244 = vmatprep.subr.mxu0 0.0
  %245 = vmatpush1.msra.mxu0 %v52
  %246 = vmatprep.subr.mxu0 0.0
  %247 = vmatpush1.msra.mxu0 %v53
  %248 = vmatprep.subr.mxu0 0.0
  %249 = vmatpush1.msra.mxu0 %v54
  %250 = vmatprep.subr.mxu0 0.0
  %251 = vmatpush1.msra.mxu0 %v55
  %252 = vmatprep.subr.mxu0 0.0
  %253 = vmatpush1.msra.mxu0 %v56
  %254 = vmatprep.subr.mxu0 0.0
  %255 = vmatpush1.msra.mxu0 %v57
  %256 = vmatprep.subr.mxu0 0.0
  %257 = vmatpush1.msra.mxu0 %v58
  %258 = vmatprep.subr.mxu0 0.0
  %259 = vmatpush1.msra.mxu0 %v59
  %260 = vmatprep.subr.mxu0 0.0
  %261 = vmatpush1.msra.mxu0 %v60
  %262 = vmatprep.subr.mxu0 0.0
  %263 = vmatpush1.msra.mxu0 %v61
  %264 = vmatprep.subr.mxu0 0.0
  %265 = vmatpush1.msra.mxu0 %v62
  %266 = vmatprep.subr.mxu0 0.0
  %267 = vmatpush1.msra.mxu0 %v63
  %268 = vmatprep.mubr.f32.mxu0 %v193
  %269 = vmatmul.mubr.f32.gmra.mrb[0].mxu0 %v192
  %v270 = vpop.f32.mrb[0].mxu0
  %v271 = vadd.f32 %v81, %v270
  %v272 = vpop.f32.mrb[0].mxu0
  %273 = vmatprep.mubr.f32.mxu0 %v195
  %274 = vmatmul.mubr.f32.gmra.mrb[0].mxu0 %v194
  %v275 = vpop.f32.mrb[0].mxu0
  %v276 = vadd.f32 %v81, %v275
  %v277 = vpop.f32.mrb[0].mxu0
  %278 = vmatprep.mubr.f32.mxu0 %v197
  %279 = vmatmul.mubr.f32.gmra.mrb[0].mxu0 %v196
  %v280 = vpop.f32.mrb[0].mxu0
  %v281 = vadd.f32 %v81, %v280
  %v282 = vpop.f32.mrb[0].mxu0
  %283 = vmatprep.mubr.f32.mxu0 %v199
  %284 = vmatmul.mubr.f32.gmra.mrb[0].mxu0 %v198
  %v285 = vpop.f32.mrb[0].mxu0
  %v286 = vadd.f32 %v81, %v285
  %v287 = vpop.f32.mrb[0].mxu0
  %288 = vmatprep.mubr.f32.mxu0 %v201
  %289 = vmatmul.mubr.f32.gmra.mrb[0].mxu0 %v200
  %v290 = vpop.f32.mrb[0].mxu0
  %v291 = vadd.f32 %v81, %v290
  %v292 = vpop.f32.mrb[0].mxu0
  %293 = vmatprep.mubr.f32.mxu0 %v203
  %294 = vmatmul.mubr.f32.gmra.mrb[0].mxu0 %v202
  %v295 = vpop.f32.mrb[0].mxu0
  %v296 = vadd.f32 %v81, %v295
  %v297 = vpop.f32.mrb[0].mxu0
  %298 = vdwg.mxu0
  %v299 = vmax.f32 %v271, 0.0
  %v300 = vmax.f32 %v276, 0.0
  %v301 = vmax.f32 %v281, 0.0
  %v302 = vmax.f32 %v286, 0.0
  %v303 = vmax.f32 %v291, 0.0
  %v304 = vmax.f32 %v296, 0.0
  %311 = vrot.lane.b32.xlu0 %v299, 16
  %v312 = vpop.permute.xlu0 %311
  %313 = vrot.lane.b32.xlu0 %v300, 16
  %v314 = vpop.permute.xlu0 %313
  %315 = vrot.lane.b32.xlu0 %v301, 16
  %v316 = vpop.permute.xlu0 %315
  %317 = vrot.lane.b32.xlu0 %v302, 16
  %v318 = vpop.permute.xlu0 %317
  %319 = vrot.lane.b32.xlu0 %v303, 16
  %v320 = vpop.permute.xlu0 %319
  %321 = vrot.lane.b32.xlu0 %v304, 16
  %v322 = vpop.permute.xlu0 %321
  %vm329 = vcmask 261248
  %330 = vst.msk [vmem:[#allocation2] sm:$0xff] %vm329, %v312
  %331 = vst.msk [vmem:[#allocation2 + $0x8] sm:$0xff] %vm329, %v314
  %332 = vst.msk [vmem:[#allocation2 + $0x10] sm:$0xff] %vm329, %v316
  %333 = vst.msk [vmem:[#allocation2 + $0x18] sm:$0xff] %vm329, %v318
  %334 = vst.msk [vmem:[#allocation2 + $0x20] sm:$0xff] %vm329, %v320
  %335 = vst.msk [vmem:[#allocation2 + $0x28] sm:$0xff] %vm329, %v322
  %s336 = scalar_lea.vmem %s0, 192
  %v337 = vld [vmem:[%s336] sm:$0xff]
  %v338 = vld [vmem:[%s336 + $0x8] sm:$0xff]
  %v339 = vld [vmem:[%s336 + $0x10] sm:$0xff]
  %v340 = vld [vmem:[%s336 + $0x18] sm:$0xff]
  %v341 = vld [vmem:[%s336 + $0x20] sm:$0xff]
  %v342 = vld [vmem:[%s336 + $0x28] sm:$0xff]
  %v343 = vld [vmem:[%s336 + $0x30] sm:$0xff]
  %v344 = vld [vmem:[%s336 + $0x38] sm:$0xff]
  %v345 = vld [vmem:[%s336 + $0x40] sm:$0xff]
  %v346 = vld [vmem:[%s336 + $0x48] sm:$0xff]
  %v347 = vld [vmem:[%s336 + $0x50] sm:$0xff]
  %v348 = vld [vmem:[%s336 + $0x58] sm:$0xff]
  %349 = vmatprep.subr.mxu0 0.0
  %350 = vmatpush1.msra.mxu0 %v32
  %351 = vmatprep.subr.mxu0 0.0
  %352 = vmatpush1.msra.mxu0 %v33
  %353 = vmatprep.subr.mxu0 0.0
  %354 = vmatpush1.msra.mxu0 %v34
  %355 = vmatprep.subr.mxu0 0.0
  %356 = vmatpush1.msra.mxu0 %v35
  %357 = vmatprep.subr.mxu0 0.0
  %358 = vmatpush1.msra.mxu0 %v36
  %359 = vmatprep.subr.mxu0 0.0
  %360 = vmatpush1.msra.mxu0 %v37
  %361 = vmatprep.subr.mxu0 0.0
  %362 = vmatpush1.msra.mxu0 %v38
  %363 = vmatprep.subr.mxu0 0.0
  %364 = vmatpush1.msra.mxu0 %v39
  %365 = vmatprep.subr.mxu0 0.0
  %366 = vmatpush1.msra.mxu0 %v40
  %367 = vmatprep.subr.mxu0 0.0
  %368 = vmatpush1.msra.mxu0 %v41
  %369 = vmatprep.subr.mxu0 0.0
  %370 = vmatpush1.msra.mxu0 %v42
  %371 = vmatprep.subr.mxu0 0.0
  %372 = vmatpush1.msra.mxu0 %v43
  %373 = vmatprep.subr.mxu0 0.0
  %374 = vmatpush1.msra.mxu0 %v44
  %375 = vmatprep.subr.mxu0 0.0
  %376 = vmatpush1.msra.mxu0 %v45
  %377 = vmatprep.subr.mxu0 0.0
  %378 = vmatpush1.msra.mxu0 %v46
  %379 = vmatprep.subr.mxu0 0.0
  %380 = vmatpush1.msra.mxu0 %v47
  %381 = vmatprep.subr.mxu0 0.0
  %382 = vmatpush1.msra.mxu0 %v48
  %383 = vmatprep.subr.mxu0 0.0
  %384 = vmatpush1.msra.mxu0 %v49
  %385 = vmatprep.subr.mxu0 0.0
  %386 = vmatpush1.msra.mxu0 %v50
  %387 = vmatprep.subr.mxu0 0.0
  %388 = vmatpush1.msra.mxu0 %v51
  %389 = vmatprep.subr.mxu0 0.0
  %390 = vmatpush1.msra.mxu0 %v52
  %391 = vmatprep.subr.mxu0 0.0
  %392 = vmatpush1.msra.mxu0 %v53
  %393 = vmatprep.subr.mxu0 0.0
  %394 = vmatpush1.msra.mxu0 %v54
  %395 = vmatprep.subr.mxu0 0.0
  %396 = vmatpush1.msra.mxu0 %v55
  %397 = vmatprep.subr.mxu0 0.0
  %398 = vmatpush1.msra.mxu0 %v56
  %399 = vmatprep.subr.mxu0 0.0
  %400 = vmatpush1.msra.mxu0 %v57
  %401 = vmatprep.subr.mxu0 0.0
  %402 = vmatpush1.msra.mxu0 %v58
  %403 = vmatprep.subr.mxu0 0.0
  %404 = vmatpush1.msra.mxu0 %v59
  %405 = vmatprep.subr.mxu0 0.0
  %406 = vmatpush1.msra.mxu0 %v60
  %407 = vmatprep.subr.mxu0 0.0
  %408 = vmatpush1.msra.mxu0 %v61
  %409 = vmatprep.subr.mxu0 0.0
  %410 = vmatpush1.msra.mxu0 %v62
  %411 = vmatprep.subr.mxu0 0.0
  %412 = vmatpush1.msra.mxu0 %v63
  %413 = vmatprep.mubr.f32.mxu0 %v338
  %414 = vmatmul.mubr.f32.gmra.mrb[0].mxu0 %v337
  %v415 = vpop.f32.mrb[0].mxu0
  %v416 = vadd.f32 %v81, %v415
  %v417 = vpop.f32.mrb[0].mxu0
  %418 = vmatprep.mubr.f32.mxu0 %v340
  %419 = vmatmul.mubr.f32.gmra.mrb[0].mxu0 %v339
  %v420 = vpop.f32.mrb[0].mxu0
  %v421 = vadd.f32 %v81, %v420
  %v422 = vpop.f32.mrb[0].mxu0
  %423 = vmatprep.mubr.f32.mxu0 %v342
  %424 = vmatmul.mubr.f32.gmra.mrb[0].mxu0 %v341
  %v425 = vpop.f32.mrb[0].mxu0
  %v426 = vadd.f32 %v81, %v425
  %v427 = vpop.f32.mrb[0].mxu0
  %428 = vmatprep.mubr.f32.mxu0 %v344
  %429 = vmatmul.mubr.f32.gmra.mrb[0].mxu0 %v343
  %v430 = vpop.f32.mrb[0].mxu0
  %v431 = vadd.f32 %v81, %v430
  %v432 = vpop.f32.mrb[0].mxu0
  %433 = vmatprep.mubr.f32.mxu0 %v346
  %434 = vmatmul.mubr.f32.gmra.mrb[0].mxu0 %v345
  %v435 = vpop.f32.mrb[0].mxu0
  %v436 = vadd.f32 %v81, %v435
  %v437 = vpop.f32.mrb[0].mxu0
  %438 = vmatprep.mubr.f32.mxu0 %v348
  %439 = vmatmul.mubr.f32.gmra.mrb[0].mxu0 %v347
  %v440 = vpop.f32.mrb[0].mxu0
  %v441 = vadd.f32 %v81, %v440
  %v442 = vpop.f32.mrb[0].mxu0
  %443 = vdwg.mxu0
  %v444 = vmax.f32 %v416, 0.0
  %v445 = vmax.f32 %v421, 0.0
  %v446 = vmax.f32 %v426, 0.0
  %v447 = vmax.f32 %v431, 0.0
  %v448 = vmax.f32 %v436, 0.0
  %v449 = vmax.f32 %v441, 0.0
  %456 = vrot.lane.b32.xlu0 %v444, 32
  %v457 = vpop.permute.xlu0 %456
  %458 = vrot.lane.b32.xlu0 %v445, 32
  %v459 = vpop.permute.xlu0 %458
  %460 = vrot.lane.b32.xlu0 %v446, 32
  %v461 = vpop.permute.xlu0 %460
  %462 = vrot.lane.b32.xlu0 %v447, 32
  %v463 = vpop.permute.xlu0 %462
  %464 = vrot.lane.b32.xlu0 %v448, 32
  %v465 = vpop.permute.xlu0 %464
  %466 = vrot.lane.b32.xlu0 %v449, 32
  %v467 = vpop.permute.xlu0 %466
  %vm474 = vcmask 392448
  %475 = vst.msk [vmem:[#allocation2] sm:$0xff] %vm474, %v457
  %476 = vst.msk [vmem:[#allocation2 + $0x8] sm:$0xff] %vm474, %v459
  %477 = vst.msk [vmem:[#allocation2 + $0x10] sm:$0xff] %vm474, %v461
  %478 = vst.msk [vmem:[#allocation2 + $0x18] sm:$0xff] %vm474, %v463
  %479 = vst.msk [vmem:[#allocation2 + $0x20] sm:$0xff] %vm474, %v465
  %480 = vst.msk [vmem:[#allocation2 + $0x28] sm:$0xff] %vm474, %v467
  %s481 = scalar_lea.vmem %s0, 288
  %v482 = vld [vmem:[%s481] sm:$0xff]
  %v483 = vld [vmem:[%s481 + $0x8] sm:$0xff]
  %v484 = vld [vmem:[%s481 + $0x10] sm:$0xff]
  %v485 = vld [vmem:[%s481 + $0x18] sm:$0xff]
  %v486 = vld [vmem:[%s481 + $0x20] sm:$0xff]
  %v487 = vld [vmem:[%s481 + $0x28] sm:$0xff]
  %v488 = vld [vmem:[%s481 + $0x30] sm:$0xff]
  %v489 = vld [vmem:[%s481 + $0x38] sm:$0xff]
  %v490 = vld [vmem:[%s481 + $0x40] sm:$0xff]
  %v491 = vld [vmem:[%s481 + $0x48] sm:$0xff]
  %v492 = vld [vmem:[%s481 + $0x50] sm:$0xff]
  %v493 = vld [vmem:[%s481 + $0x58] sm:$0xff]
  %494 = vmatprep.subr.mxu0 0.0
  %495 = vmatpush1.msra.mxu0 %v32
  %496 = vmatprep.subr.mxu0 0.0
  %497 = vmatpush1.msra.mxu0 %v33
  %498 = vmatprep.subr.mxu0 0.0
  %499 = vmatpush1.msra.mxu0 %v34
  %500 = vmatprep.subr.mxu0 0.0
  %501 = vmatpush1.msra.mxu0 %v35
  %502 = vmatprep.subr.mxu0 0.0
  %503 = vmatpush1.msra.mxu0 %v36
  %504 = vmatprep.subr.mxu0 0.0
  %505 = vmatpush1.msra.mxu0 %v37
  %506 = vmatprep.subr.mxu0 0.0
  %507 = vmatpush1.msra.mxu0 %v38
  %508 = vmatprep.subr.mxu0 0.0
  %509 = vmatpush1.msra.mxu0 %v39
  %510 = vmatprep.subr.mxu0 0.0
  %511 = vmatpush1.msra.mxu0 %v40
  %512 = vmatprep.subr.mxu0 0.0
  %513 = vmatpush1.msra.mxu0 %v41
  %514 = vmatprep.subr.mxu0 0.0
  %515 = vmatpush1.msra.mxu0 %v42
  %516 = vmatprep.subr.mxu0 0.0
  %517 = vmatpush1.msra.mxu0 %v43
  %518 = vmatprep.subr.mxu0 0.0
  %519 = vmatpush1.msra.mxu0 %v44
  %520 = vmatprep.subr.mxu0 0.0
  %521 = vmatpush1.msra.mxu0 %v45
  %522 = vmatprep.subr.mxu0 0.0
  %523 = vmatpush1.msra.mxu0 %v46
  %524 = vmatprep.subr.mxu0 0.0
  %525 = vmatpush1.msra.mxu0 %v47
  %526 = vmatprep.subr.mxu0 0.0
  %527 = vmatpush1.msra.mxu0 %v48
  %528 = vmatprep.subr.mxu0 0.0
  %529 = vmatpush1.msra.mxu0 %v49
  %530 = vmatprep.subr.mxu0 0.0
  %531 = vmatpush1.msra.mxu0 %v50
  %532 = vmatprep.subr.mxu0 0.0
  %533 = vmatpush1.msra.mxu0 %v51
  %534 = vmatprep.subr.mxu0 0.0
  %535 = vmatpush1.msra.mxu0 %v52
  %536 = vmatprep.subr.mxu0 0.0
  %537 = vmatpush1.msra.mxu0 %v53
  %538 = vmatprep.subr.mxu0 0.0
  %539 = vmatpush1.msra.mxu0 %v54
  %540 = vmatprep.subr.mxu0 0.0
  %541 = vmatpush1.msra.mxu0 %v55
  %542 = vmatprep.subr.mxu0 0.0
  %543 = vmatpush1.msra.mxu0 %v56
  %544 = vmatprep.subr.mxu0 0.0
  %545 = vmatpush1.msra.mxu0 %v57
  %546 = vmatprep.subr.mxu0 0.0
  %547 = vmatpush1.msra.mxu0 %v58
  %548 = vmatprep.subr.mxu0 0.0
  %549 = vmatpush1.msra.mxu0 %v59
  %550 = vmatprep.subr.mxu0 0.0
  %551 = vmatpush1.msra.mxu0 %v60
  %552 = vmatprep.subr.mxu0 0.0
  %553 = vmatpush1.msra.mxu0 %v61
  %554 = vmatprep.subr.mxu0 0.0
  %555 = vmatpush1.msra.mxu0 %v62
  %556 = vmatprep.subr.mxu0 0.0
  %557 = vmatpush1.msra.mxu0 %v63
  %558 = vmatprep.mubr.f32.mxu0 %v483
  %559 = vmatmul.mubr.f32.gmra.mrb[0].mxu0 %v482
  %v560 = vpop.f32.mrb[0].mxu0
  %v561 = vadd.f32 %v81, %v560
  %v562 = vpop.f32.mrb[0].mxu0
  %563 = vmatprep.mubr.f32.mxu0 %v485
  %564 = vmatmul.mubr.f32.gmra.mrb[0].mxu0 %v484
  %v565 = vpop.f32.mrb[0].mxu0
  %v566 = vadd.f32 %v81, %v565
  %v567 = vpop.f32.mrb[0].mxu0
  %568 = vmatprep.mubr.f32.mxu0 %v487
  %569 = vmatmul.mubr.f32.gmra.mrb[0].mxu0 %v486
  %v570 = vpop.f32.mrb[0].mxu0
  %v571 = vadd.f32 %v81, %v570
  %v572 = vpop.f32.mrb[0].mxu0
  %573 = vmatprep.mubr.f32.mxu0 %v489
  %574 = vmatmul.mubr.f32.gmra.mrb[0].mxu0 %v488
  %v575 = vpop.f32.mrb[0].mxu0
  %v576 = vadd.f32 %v81, %v575
  %v577 = vpop.f32.mrb[0].mxu0
  %578 = vmatprep.mubr.f32.mxu0 %v491
  %579 = vmatmul.mubr.f32.gmra.mrb[0].mxu0 %v490
  %v580 = vpop.f32.mrb[0].mxu0
  %v581 = vadd.f32 %v81, %v580
  %v582 = vpop.f32.mrb[0].mxu0
  %583 = vmatprep.mubr.f32.mxu0 %v493
  %584 = vmatmul.mubr.f32.gmra.mrb[0].mxu0 %v492
  %v585 = vpop.f32.mrb[0].mxu0
  %v586 = vadd.f32 %v81, %v585
  %v587 = vpop.f32.mrb[0].mxu0
  %588 = vdwg.mxu0
  %v589 = vmax.f32 %v561, 0.0
  %v590 = vmax.f32 %v566, 0.0
  %v591 = vmax.f32 %v571, 0.0
  %v592 = vmax.f32 %v576, 0.0
  %v593 = vmax.f32 %v581, 0.0
  %v594 = vmax.f32 %v586, 0.0
  %601 = vrot.lane.b32.xlu0 %v589, 48
  %v602 = vpop.permute.xlu0 %601
  %603 = vrot.lane.b32.xlu0 %v590, 48
  %v604 = vpop.permute.xlu0 %603
  %605 = vrot.lane.b32.xlu0 %v591, 48
  %v606 = vpop.permute.xlu0 %605
  %607 = vrot.lane.b32.xlu0 %v592, 48
  %v608 = vpop.permute.xlu0 %607
  %609 = vrot.lane.b32.xlu0 %v593, 48
  %v610 = vpop.permute.xlu0 %609
  %611 = vrot.lane.b32.xlu0 %v594, 48
  %v612 = vpop.permute.xlu0 %611
  %vm619 = vcmask 523648
  %620 = vst.msk [vmem:[#allocation2] sm:$0xff] %vm619, %v602
  %621 = vst.msk [vmem:[#allocation2 + $0x8] sm:$0xff] %vm619, %v604
  %622 = vst.msk [vmem:[#allocation2 + $0x10] sm:$0xff] %vm619, %v606
  %623 = vst.msk [vmem:[#allocation2 + $0x18] sm:$0xff] %vm619, %v608
  %624 = vst.msk [vmem:[#allocation2 + $0x20] sm:$0xff] %vm619, %v610
  %625 = vst.msk [vmem:[#allocation2 + $0x28] sm:$0xff] %vm619, %v612
  %s626 = scalar_lea.vmem %s0, 384
  %v627 = vld [vmem:[%s626] sm:$0xff]
  %v628 = vld [vmem:[%s626 + $0x8] sm:$0xff]
  %v629 = vld [vmem:[%s626 + $0x10] sm:$0xff]
  %v630 = vld [vmem:[%s626 + $0x18] sm:$0xff]
  %v631 = vld [vmem:[%s626 + $0x20] sm:$0xff]
  %v632 = vld [vmem:[%s626 + $0x28] sm:$0xff]
  %v633 = vld [vmem:[%s626 + $0x30] sm:$0xff]
  %v634 = vld [vmem:[%s626 + $0x38] sm:$0xff]
  %v635 = vld [vmem:[%s626 + $0x40] sm:$0xff]
  %v636 = vld [vmem:[%s626 + $0x48] sm:$0xff]
  %v637 = vld [vmem:[%s626 + $0x50] sm:$0xff]
  %v638 = vld [vmem:[%s626 + $0x58] sm:$0xff]
  %639 = vmatprep.subr.mxu0 0.0
  %640 = vmatpush1.msra.mxu0 %v32
  %641 = vmatprep.subr.mxu0 0.0
  %642 = vmatpush1.msra.mxu0 %v33
  %643 = vmatprep.subr.mxu0 0.0
  %644 = vmatpush1.msra.mxu0 %v34
  %645 = vmatprep.subr.mxu0 0.0
  %646 = vmatpush1.msra.mxu0 %v35
  %647 = vmatprep.subr.mxu0 0.0
  %648 = vmatpush1.msra.mxu0 %v36
  %649 = vmatprep.subr.mxu0 0.0
  %650 = vmatpush1.msra.mxu0 %v37
  %651 = vmatprep.subr.mxu0 0.0
  %652 = vmatpush1.msra.mxu0 %v38
  %653 = vmatprep.subr.mxu0 0.0
  %654 = vmatpush1.msra.mxu0 %v39
  %655 = vmatprep.subr.mxu0 0.0
  %656 = vmatpush1.msra.mxu0 %v40
  %657 = vmatprep.subr.mxu0 0.0
  %658 = vmatpush1.msra.mxu0 %v41
  %659 = vmatprep.subr.mxu0 0.0
  %660 = vmatpush1.msra.mxu0 %v42
  %661 = vmatprep.subr.mxu0 0.0
  %662 = vmatpush1.msra.mxu0 %v43
  %663 = vmatprep.subr.mxu0 0.0
  %664 = vmatpush1.msra.mxu0 %v44
  %665 = vmatprep.subr.mxu0 0.0
  %666 = vmatpush1.msra.mxu0 %v45
  %667 = vmatprep.subr.mxu0 0.0
  %668 = vmatpush1.msra.mxu0 %v46
  %669 = vmatprep.subr.mxu0 0.0
  %670 = vmatpush1.msra.mxu0 %v47
  %671 = vmatprep.subr.mxu0 0.0
  %672 = vmatpush1.msra.mxu0 %v48
  %673 = vmatprep.subr.mxu0 0.0
  %674 = vmatpush1.msra.mxu0 %v49
  %675 = vmatprep.subr.mxu0 0.0
  %676 = vmatpush1.msra.mxu0 %v50
  %677 = vmatprep.subr.mxu0 0.0
  %678 = vmatpush1.msra.mxu0 %v51
  %679 = vmatprep.subr.mxu0 0.0
  %680 = vmatpush1.msra.mxu0 %v52
  %681 = vmatprep.subr.mxu0 0.0
  %682 = vmatpush1.msra.mxu0 %v53
  %683 = vmatprep.subr.mxu0 0.0
  %684 = vmatpush1.msra.mxu0 %v54
  %685 = vmatprep.subr.mxu0 0.0
  %686 = vmatpush1.msra.mxu0 %v55
  %687 = vmatprep.subr.mxu0 0.0
  %688 = vmatpush1.msra.mxu0 %v56
  %689 = vmatprep.subr.mxu0 0.0
  %690 = vmatpush1.msra.mxu0 %v57
  %691 = vmatprep.subr.mxu0 0.0
  %692 = vmatpush1.msra.mxu0 %v58
  %693 = vmatprep.subr.mxu0 0.0
  %694 = vmatpush1.msra.mxu0 %v59
  %695 = vmatprep.subr.mxu0 0.0
  %696 = vmatpush1.msra.mxu0 %v60
  %697 = vmatprep.subr.mxu0 0.0
  %698 = vmatpush1.msra.mxu0 %v61
  %699 = vmatprep.subr.mxu0 0.0
  %700 = vmatpush1.msra.mxu0 %v62
  %701 = vmatprep.subr.mxu0 0.0
  %702 = vmatpush1.msra.mxu0 %v63
  %703 = vmatprep.mubr.f32.mxu0 %v628
  %704 = vmatmul.mubr.f32.gmra.mrb[0].mxu0 %v627
  %v705 = vpop.f32.mrb[0].mxu0
  %v706 = vadd.f32 %v81, %v705
  %v707 = vpop.f32.mrb[0].mxu0
  %708 = vmatprep.mubr.f32.mxu0 %v630
  %709 = vmatmul.mubr.f32.gmra.mrb[0].mxu0 %v629
  %v710 = vpop.f32.mrb[0].mxu0
  %v711 = vadd.f32 %v81, %v710
  %v712 = vpop.f32.mrb[0].mxu0
  %713 = vmatprep.mubr.f32.mxu0 %v632
  %714 = vmatmul.mubr.f32.gmra.mrb[0].mxu0 %v631
  %v715 = vpop.f32.mrb[0].mxu0
  %v716 = vadd.f32 %v81, %v715
  %v717 = vpop.f32.mrb[0].mxu0
  %718 = vmatprep.mubr.f32.mxu0 %v634
  %719 = vmatmul.mubr.f32.gmra.mrb[0].mxu0 %v633
  %v720 = vpop.f32.mrb[0].mxu0
  %v721 = vadd.f32 %v81, %v720
  %v722 = vpop.f32.mrb[0].mxu0
  %723 = vmatprep.mubr.f32.mxu0 %v636
  %724 = vmatmul.mubr.f32.gmra.mrb[0].mxu0 %v635
  %v725 = vpop.f32.mrb[0].mxu0
  %v726 = vadd.f32 %v81, %v725
  %v727 = vpop.f32.mrb[0].mxu0
  %728 = vmatprep.mubr.f32.mxu0 %v638
  %729 = vmatmul.mubr.f32.gmra.mrb[0].mxu0 %v637
  %v730 = vpop.f32.mrb[0].mxu0
  %v731 = vadd.f32 %v81, %v730
  %v732 = vpop.f32.mrb[0].mxu0
  %733 = vdwg.mxu0
  %v734 = vmax.f32 %v706, 0.0
  %v735 = vmax.f32 %v711, 0.0
  %v736 = vmax.f32 %v716, 0.0
  %v737 = vmax.f32 %v721, 0.0
  %v738 = vmax.f32 %v726, 0.0
  %v739 = vmax.f32 %v731, 0.0
  %746 = vrot.lane.b32.xlu0 %v734, 64
  %v747 = vpop.permute.xlu0 %746
  %748 = vrot.lane.b32.xlu0 %v735, 64
  %v749 = vpop.permute.xlu0 %748
  %750 = vrot.lane.b32.xlu0 %v736, 64
  %v751 = vpop.permute.xlu0 %750
  %752 = vrot.lane.b32.xlu0 %v737, 64
  %v753 = vpop.permute.xlu0 %752
  %754 = vrot.lane.b32.xlu0 %v738, 64
  %v755 = vpop.permute.xlu0 %754
  %756 = vrot.lane.b32.xlu0 %v739, 64
  %v757 = vpop.permute.xlu0 %756
  %vm764 = vcmask 654848
  %765 = vst.msk [vmem:[#allocation2] sm:$0xff] %vm764, %v747
  %766 = vst.msk [vmem:[#allocation2 + $0x8] sm:$0xff] %vm764, %v749
  %767 = vst.msk [vmem:[#allocation2 + $0x10] sm:$0xff] %vm764, %v751
  %768 = vst.msk [vmem:[#allocation2 + $0x18] sm:$0xff] %vm764, %v753
  %769 = vst.msk [vmem:[#allocation2 + $0x20] sm:$0xff] %vm764, %v755
  %770 = vst.msk [vmem:[#allocation2 + $0x28] sm:$0xff] %vm764, %v757
  %s771 = scalar_lea.vmem %s0, 480
  %v772 = vld [vmem:[%s771] sm:$0xff]
  %v773 = vld [vmem:[%s771 + $0x8] sm:$0xff]
  %v774 = vld [vmem:[%s771 + $0x10] sm:$0xff]
  %v775 = vld [vmem:[%s771 + $0x18] sm:$0xff]
  %v776 = vld [vmem:[%s771 + $0x20] sm:$0xff]
  %v777 = vld [vmem:[%s771 + $0x28] sm:$0xff]
  %v778 = vld [vmem:[%s771 + $0x30] sm:$0xff]
  %v779 = vld [vmem:[%s771 + $0x38] sm:$0xff]
  %v780 = vld [vmem:[%s771 + $0x40] sm:$0xff]
  %v781 = vld [vmem:[%s771 + $0x48] sm:$0xff]
  %v782 = vld [vmem:[%s771 + $0x50] sm:$0xff]
  %v783 = vld [vmem:[%s771 + $0x58] sm:$0xff]
  %784 = vmatprep.subr.mxu0 0.0
  %785 = vmatpush1.msra.mxu0 %v32
  %786 = vmatprep.subr.mxu0 0.0
  %787 = vmatpush1.msra.mxu0 %v33
  %788 = vmatprep.subr.mxu0 0.0
  %789 = vmatpush1.msra.mxu0 %v34
  %790 = vmatprep.subr.mxu0 0.0
  %791 = vmatpush1.msra.mxu0 %v35
  %792 = vmatprep.subr.mxu0 0.0
  %793 = vmatpush1.msra.mxu0 %v36
  %794 = vmatprep.subr.mxu0 0.0
  %795 = vmatpush1.msra.mxu0 %v37
  %796 = vmatprep.subr.mxu0 0.0
  %797 = vmatpush1.msra.mxu0 %v38
  %798 = vmatprep.subr.mxu0 0.0
  %799 = vmatpush1.msra.mxu0 %v39
  %800 = vmatprep.subr.mxu0 0.0
  %801 = vmatpush1.msra.mxu0 %v40
  %802 = vmatprep.subr.mxu0 0.0
  %803 = vmatpush1.msra.mxu0 %v41
  %804 = vmatprep.subr.mxu0 0.0
  %805 = vmatpush1.msra.mxu0 %v42
  %806 = vmatprep.subr.mxu0 0.0
  %807 = vmatpush1.msra.mxu0 %v43
  %808 = vmatprep.subr.mxu0 0.0
  %809 = vmatpush1.msra.mxu0 %v44
  %810 = vmatprep.subr.mxu0 0.0
  %811 = vmatpush1.msra.mxu0 %v45
  %812 = vmatprep.subr.mxu0 0.0
  %813 = vmatpush1.msra.mxu0 %v46
  %814 = vmatprep.subr.mxu0 0.0
  %815 = vmatpush1.msra.mxu0 %v47
  %816 = vmatprep.subr.mxu0 0.0
  %817 = vmatpush1.msra.mxu0 %v48
  %818 = vmatprep.subr.mxu0 0.0
  %819 = vmatpush1.msra.mxu0 %v49
  %820 = vmatprep.subr.mxu0 0.0
  %821 = vmatpush1.msra.mxu0 %v50
  %822 = vmatprep.subr.mxu0 0.0
  %823 = vmatpush1.msra.mxu0 %v51
  %824 = vmatprep.subr.mxu0 0.0
  %825 = vmatpush1.msra.mxu0 %v52
  %826 = vmatprep.subr.mxu0 0.0
  %827 = vmatpush1.msra.mxu0 %v53
  %828 = vmatprep.subr.mxu0 0.0
  %829 = vmatpush1.msra.mxu0 %v54
  %830 = vmatprep.subr.mxu0 0.0
  %831 = vmatpush1.msra.mxu0 %v55
  %832 = vmatprep.subr.mxu0 0.0
  %833 = vmatpush1.msra.mxu0 %v56
  %834 = vmatprep.subr.mxu0 0.0
  %835 = vmatpush1.msra.mxu0 %v57
  %836 = vmatprep.subr.mxu0 0.0
  %837 = vmatpush1.msra.mxu0 %v58
  %838 = vmatprep.subr.mxu0 0.0
  %839 = vmatpush1.msra.mxu0 %v59
  %840 = vmatprep.subr.mxu0 0.0
  %841 = vmatpush1.msra.mxu0 %v60
  %842 = vmatprep.subr.mxu0 0.0
  %843 = vmatpush1.msra.mxu0 %v61
  %844 = vmatprep.subr.mxu0 0.0
  %845 = vmatpush1.msra.mxu0 %v62
  %846 = vmatprep.subr.mxu0 0.0
  %847 = vmatpush1.msra.mxu0 %v63
  %848 = vmatprep.mubr.f32.mxu0 %v773
  %849 = vmatmul.mubr.f32.gmra.mrb[0].mxu0 %v772
  %v850 = vpop.f32.mrb[0].mxu0
  %v851 = vadd.f32 %v81, %v850
  %v852 = vpop.f32.mrb[0].mxu0
  %853 = vmatprep.mubr.f32.mxu0 %v775
  %854 = vmatmul.mubr.f32.gmra.mrb[0].mxu0 %v774
  %v855 = vpop.f32.mrb[0].mxu0
  %v856 = vadd.f32 %v81, %v855
  %v857 = vpop.f32.mrb[0].mxu0
  %858 = vmatprep.mubr.f32.mxu0 %v777
  %859 = vmatmul.mubr.f32.gmra.mrb[0].mxu0 %v776
  %v860 = vpop.f32.mrb[0].mxu0
  %v861 = vadd.f32 %v81, %v860
  %v862 = vpop.f32.mrb[0].mxu0
  %863 = vmatprep.mubr.f32.mxu0 %v779
  %864 = vmatmul.mubr.f32.gmra.mrb[0].mxu0 %v778
  %v865 = vpop.f32.mrb[0].mxu0
  %v866 = vadd.f32 %v81, %v865
  %v867 = vpop.f32.mrb[0].mxu0
  %868 = vmatprep.mubr.f32.mxu0 %v781
  %869 = vmatmul.mubr.f32.gmra.mrb[0].mxu0 %v780
  %v870 = vpop.f32.mrb[0].mxu0
  %v871 = vadd.f32 %v81, %v870
  %v872 = vpop.f32.mrb[0].mxu0
  %873 = vmatprep.mubr.f32.mxu0 %v783
  %874 = vmatmul.mubr.f32.gmra.mrb[0].mxu0 %v782
  %v875 = vpop.f32.mrb[0].mxu0
  %v876 = vadd.f32 %v81, %v875
  %v877 = vpop.f32.mrb[0].mxu0
  %878 = vdwg.mxu0
  %v879 = vmax.f32 %v851, 0.0
  %v880 = vmax.f32 %v856, 0.0
  %v881 = vmax.f32 %v861, 0.0
  %v882 = vmax.f32 %v866, 0.0
  %v883 = vmax.f32 %v871, 0.0
  %v884 = vmax.f32 %v876, 0.0
  %891 = vrot.lane.b32.xlu0 %v879, 80
  %v892 = vpop.permute.xlu0 %891
  %893 = vrot.lane.b32.xlu0 %v880, 80
  %v894 = vpop.permute.xlu0 %893
  %895 = vrot.lane.b32.xlu0 %v881, 80
  %v896 = vpop.permute.xlu0 %895
  %897 = vrot.lane.b32.xlu0 %v882, 80
  %v898 = vpop.permute.xlu0 %897
  %899 = vrot.lane.b32.xlu0 %v883, 80
  %v900 = vpop.permute.xlu0 %899
  %901 = vrot.lane.b32.xlu0 %v884, 80
  %v902 = vpop.permute.xlu0 %901
  %vm909 = vcmask 786048
  %910 = vst.msk [vmem:[#allocation2] sm:$0xff] %vm909, %v892
  %911 = vst.msk [vmem:[#allocation2 + $0x8] sm:$0xff] %vm909, %v894
  %912 = vst.msk [vmem:[#allocation2 + $0x10] sm:$0xff] %vm909, %v896
  %913 = vst.msk [vmem:[#allocation2 + $0x18] sm:$0xff] %vm909, %v898
  %914 = vst.msk [vmem:[#allocation2 + $0x20] sm:$0xff] %vm909, %v900
  %915 = vst.msk [vmem:[#allocation2 + $0x28] sm:$0xff] %vm909, %v902
  %v916 = vld [vmem:[#allocation2] sm:$0xff]
  %vm917 = vcmask 523264
  %918 = vst.msk [vmem:[#allocation3] sm:$0xff] %vm917, %v916
  %v919 = vld [vmem:[#allocation2 + $0x8] sm:$0xff]
  %921 = vrot.lane.b32.xlu0 %v919, 64
  %v922 = vpop.permute.xlu0 %921
  %vm924 = vcmask 1048064
  %925 = vst.msk [vmem:[#allocation3] sm:$0xff] %vm924, %v922
  %v926 = vld [vmem:[#allocation2 + $0x10] sm:$0xff]
  %927 = vst.msk [vmem:[#allocation3 + $0x8] sm:$0xff] %vm917, %v926
  %v928 = vld [vmem:[#allocation2 + $0x18] sm:$0xff]
  %930 = vrot.lane.b32.xlu0 %v928, 64
  %v931 = vpop.permute.xlu0 %930
  %933 = vst.msk [vmem:[#allocation3 + $0x8] sm:$0xff] %vm924, %v931
  %v934 = vld [vmem:[#allocation2] sm:$0xff]
  %936 = vrot.lane.b32.xlu0 %v934, 96
  %v937 = vpop.permute.xlu0 %936
  %939 = vst.msk [vmem:[#allocation3 + $0x10] sm:$0xff] %vm917, %v937
  %v940 = vld [vmem:[#allocation2 + $0x8] sm:$0xff]
  %942 = vrot.lane.b32.xlu0 %v940, 32
  %v943 = vpop.permute.xlu0 %942
  %945 = vst.msk [vmem:[#allocation3 + $0x10] sm:$0xff] %vm924, %v943
  %v946 = vld [vmem:[#allocation2 + $0x10] sm:$0xff]
  %948 = vrot.lane.b32.xlu0 %v946, 96
  %v949 = vpop.permute.xlu0 %948
  %951 = vst.msk [vmem:[#allocation3 + $0x18] sm:$0xff] %vm917, %v949
  %v952 = vld [vmem:[#allocation2 + $0x18] sm:$0xff]
  %954 = vrot.lane.b32.xlu0 %v952, 32
  %v955 = vpop.permute.xlu0 %954
  %957 = vst.msk [vmem:[#allocation3 + $0x18] sm:$0xff] %vm924, %v955
  %v958 = vld [vmem:[#allocation2 + $0x10] sm:$0xff]
  %959 = vst.msk [vmem:[#allocation3 + $0x20] sm:$0xff] %vm917, %v958
  %v960 = vld [vmem:[#allocation2 + $0x18] sm:$0xff]
  %962 = vrot.lane.b32.xlu0 %v960, 64
  %v963 = vpop.permute.xlu0 %962
  %965 = vst.msk [vmem:[#allocation3 + $0x20] sm:$0xff] %vm924, %v963
  %v966 = vld [vmem:[#allocation2 + $0x20] sm:$0xff]
  %967 = vst.msk [vmem:[#allocation3 + $0x28] sm:$0xff] %vm917, %v966
  %v968 = vld [vmem:[#allocation2 + $0x28] sm:$0xff]
  %970 = vrot.lane.b32.xlu0 %v968, 64
  %v971 = vpop.permute.xlu0 %970
  %973 = vst.msk [vmem:[#allocation3 + $0x28] sm:$0xff] %vm924, %v971
  %v974 = vld [vmem:[#allocation2 + $0x10] sm:$0xff]
  %976 = vrot.lane.b32.xlu0 %v974, 96
  %v977 = vpop.permute.xlu0 %976
  %979 = vst.msk [vmem:[#allocation3 + $0x30] sm:$0xff] %vm917, %v977
  %v980 = vld [vmem:[#allocation2 + $0x18] sm:$0xff]
  %982 = vrot.lane.b32.xlu0 %v980, 32
  %v983 = vpop.permute.xlu0 %982
  %985 = vst.msk [vmem:[#allocation3 + $0x30] sm:$0xff] %vm924, %v983
  %v986 = vld [vmem:[#allocation2 + $0x20] sm:$0xff]
  %988 = vrot.lane.b32.xlu0 %v986, 96
  %v989 = vpop.permute.xlu0 %988
  %991 = vst.msk [vmem:[#allocation3 + $0x38] sm:$0xff] %vm917, %v989
  %v992 = vld [vmem:[#allocation2 + $0x28] sm:$0xff]
  %994 = vrot.lane.b32.xlu0 %v992, 32
  %v995 = vpop.permute.xlu0 %994
  %997 = vst.msk [vmem:[#allocation3 + $0x38] sm:$0xff] %vm924, %v995
  %v998 = vld [vmem:[#allocation3] sm:$0xff]
  %v999 = vld [vmem:[#allocation3 + $0x8] sm:$0xff]
  %v1000 = vld [vmem:[#allocation3 + $0x10] sm:$0xff]
  %v1001 = vld [vmem:[#allocation3 + $0x18] sm:$0xff]
  %v1002 = vld [vmem:[#allocation3 + $0x20] sm:$0xff]
  %v1003 = vld [vmem:[#allocation3 + $0x28] sm:$0xff]
  %v1004 = vld [vmem:[#allocation3 + $0x30] sm:$0xff]
  %v1005 = vld [vmem:[#allocation3 + $0x38] sm:$0xff]
  %v1006 = vld [vmem:[%s3] sm:$0xff]
  %v1007 = vld [vmem:[%s3 + $0x8] sm:$0xff]
  %v1008 = vld [vmem:[%s3 + $0x10] sm:$0xff]
  %v1009 = vld [vmem:[%s3 + $0x18] sm:$0xff]
  %v1010 = vld [vmem:[%s3 + $0x20] sm:$0xff]
  %v1011 = vld [vmem:[%s3 + $0x28] sm:$0xff]
  %v1012 = vld [vmem:[%s3 + $0x30] sm:$0xff]
  %v1013 = vld [vmem:[%s3 + $0x38] sm:$0xff]
  %v1014 = vld [vmem:[%s3 + $0x40] sm:$0xff]
  %v1015 = vld [vmem:[%s3 + $0x48] sm:$0xff]
  %v1016 = vld [vmem:[%s3 + $0x50] sm:$0xff]
  %v1017 = vld [vmem:[%s3 + $0x58] sm:$0xff]
  %v1018 = vld [vmem:[%s3 + $0x60] sm:$0xff]
  %v1019 = vld [vmem:[%s3 + $0x68] sm:$0xff]
  %v1020 = vld [vmem:[%s3 + $0x70] sm:$0xff]
  %v1021 = vld [vmem:[%s3 + $0x78] sm:$0xff]
  %v1022 = vld [vmem:[%s3 + $0x80] sm:$0xff]
  %v1023 = vld [vmem:[%s3 + $0x88] sm:$0xff]
  %v1024 = vld [vmem:[%s3 + $0x90] sm:$0xff]
  %v1025 = vld [vmem:[%s3 + $0x98] sm:$0xff]
  %v1026 = vld [vmem:[%s3 + $0xa0] sm:$0xff]
  %v1027 = vld [vmem:[%s3 + $0xa8] sm:$0xff]
  %v1028 = vld [vmem:[%s3 + $0xb0] sm:$0xff]
  %v1029 = vld [vmem:[%s3 + $0xb8] sm:$0xff]
  %v1030 = vld [vmem:[%s3 + $0xc0] sm:$0xff]
  %v1031 = vld [vmem:[%s3 + $0xc8] sm:$0xff]
  %v1032 = vld [vmem:[%s3 + $0xd0] sm:$0xff]
  %v1033 = vld [vmem:[%s3 + $0xd8] sm:$0xff]
  %v1034 = vld [vmem:[%s3 + $0xe0] sm:$0xff]
  %v1035 = vld [vmem:[%s3 + $0xe8] sm:$0xff]
  %v1036 = vld [vmem:[%s3 + $0xf0] sm:$0xff]
  %v1037 = vld [vmem:[%s3 + $0xf8] sm:$0xff]
  %v1038 = vld [vmem:[%s4] sm:$0x1]
  %v1040 = vlaneseq
  %v1041 = vshrl.u32 %v1040, 7
  %v1042 = vsub.s32 0, %v1041
  %v1043 = vrot.slane %v1038, %v1042
  %1045 = vmatprep.subr.mxu0 0.0
  %1046 = vmatpush1.msra.mxu0 %v1006
  %1047 = vmatprep.subr.mxu0 0.0
  %1048 = vmatpush1.msra.mxu0 %v1007
  %1049 = vmatprep.subr.mxu0 0.0
  %1050 = vmatpush1.msra.mxu0 %v1008
  %1051 = vmatprep.subr.mxu0 0.0
  %1052 = vmatpush1.msra.mxu0 %v1009
  %1053 = vmatprep.subr.mxu0 0.0
  %1054 = vmatpush1.msra.mxu0 %v1010
  %1055 = vmatprep.subr.mxu0 0.0
  %1056 = vmatpush1.msra.mxu0 %v1011
  %1057 = vmatprep.subr.mxu0 0.0
  %1058 = vmatpush1.msra.mxu0 %v1012
  %1059 = vmatprep.subr.mxu0 0.0
  %1060 = vmatpush1.msra.mxu0 %v1013
  %1061 = vmatprep.subr.mxu0 0.0
  %1062 = vmatpush1.msra.mxu0 %v1014
  %1063 = vmatprep.subr.mxu0 0.0
  %1064 = vmatpush1.msra.mxu0 %v1015
  %1065 = vmatprep.subr.mxu0 0.0
  %1066 = vmatpush1.msra.mxu0 %v1016
  %1067 = vmatprep.subr.mxu0 0.0
  %1068 = vmatpush1.msra.mxu0 %v1017
  %1069 = vmatprep.subr.mxu0 0.0
  %1070 = vmatpush1.msra.mxu0 %v1018
  %1071 = vmatprep.subr.mxu0 0.0
  %1072 = vmatpush1.msra.mxu0 %v1019
  %1073 = vmatprep.subr.mxu0 0.0
  %1074 = vmatpush1.msra.mxu0 %v1020
  %1075 = vmatprep.subr.mxu0 0.0
  %1076 = vmatpush1.msra.mxu0 %v1021
  %1077 = vmatprep.subr.mxu0 0.0
  %1078 = vmatpush1.msra.mxu0 %v1022
  %1079 = vmatprep.subr.mxu0 0.0
  %1080 = vmatpush1.msra.mxu0 %v1023
  %1081 = vmatprep.subr.mxu0 0.0
  %1082 = vmatpush1.msra.mxu0 %v1024
  %1083 = vmatprep.subr.mxu0 0.0
  %1084 = vmatpush1.msra.mxu0 %v1025
  %1085 = vmatprep.subr.mxu0 0.0
  %1086 = vmatpush1.msra.mxu0 %v1026
  %1087 = vmatprep.subr.mxu0 0.0
  %1088 = vmatpush1.msra.mxu0 %v1027
  %1089 = vmatprep.subr.mxu0 0.0
  %1090 = vmatpush1.msra.mxu0 %v1028
  %1091 = vmatprep.subr.mxu0 0.0
  %1092 = vmatpush1.msra.mxu0 %v1029
  %1093 = vmatprep.subr.mxu0 0.0
  %1094 = vmatpush1.msra.mxu0 %v1030
  %1095 = vmatprep.subr.mxu0 0.0
  %1096 = vmatpush1.msra.mxu0 %v1031
  %1097 = vmatprep.subr.mxu0 0.0
  %1098 = vmatpush1.msra.mxu0 %v1032
  %1099 = vmatprep.subr.mxu0 0.0
  %1100 = vmatpush1.msra.mxu0 %v1033
  %1101 = vmatprep.subr.mxu0 0.0
  %1102 = vmatpush1.msra.mxu0 %v1034
  %1103 = vmatprep.subr.mxu0 0.0
  %1104 = vmatpush1.msra.mxu0 %v1035
  %1105 = vmatprep.subr.mxu0 0.0
  %1106 = vmatpush1.msra.mxu0 %v1036
  %1107 = vmatprep.subr.mxu0 0.0
  %1108 = vmatpush1.msra.mxu0 %v1037
  %1109 = vmatprep.mubr.f32.mxu0 %v999
  %1110 = vmatmul.mubr.f32.gmra.mrb[0].mxu0 %v998
  %v1111 = vpop.f32.mrb[0].mxu0
  %v1112 = vadd.f32 %v1043, %v1111
  %v1113 = vpop.f32.mrb[0].mxu0
  %1114 = vmatprep.mubr.f32.mxu0 %v1001
  %1115 = vmatmul.mubr.f32.gmra.mrb[0].mxu0 %v1000
  %v1116 = vpop.f32.mrb[0].mxu0
  %v1117 = vadd.f32 %v1043, %v1116
  %v1118 = vpop.f32.mrb[0].mxu0
  %1119 = vmatprep.mubr.f32.mxu0 %v1003
  %1120 = vmatmul.mubr.f32.gmra.mrb[0].mxu0 %v1002
  %v1121 = vpop.f32.mrb[0].mxu0
  %v1122 = vadd.f32 %v1043, %v1121
  %v1123 = vpop.f32.mrb[0].mxu0
  %1124 = vmatprep.mubr.f32.mxu0 %v1005
  %1125 = vmatmul.mubr.f32.gmra.mrb[0].mxu0 %v1004
  %v1126 = vpop.f32.mrb[0].mxu0
  %v1127 = vadd.f32 %v1043, %v1126
  %v1128 = vpop.f32.mrb[0].mxu0
  %1129 = vdwg.mxu0
  %v1130 = vmax.f32 %v1112, 0.0
  %v1131 = vmax.f32 %v1117, 0.0
  %v1132 = vmax.f32 %v1122, 0.0
  %v1133 = vmax.f32 %v1127, 0.0
  %vm1134 = vcmask 261120
  %1135 = vst.msk [vmem:[#allocation4] sm:$0xff] %vm1134, %v1130
  %1137 = vrot.lane.b32.xlu0 %v1131, 32
  %v1138 = vpop.permute.xlu0 %1137
  %vm1140 = vcmask 523520
  %1141 = vst.msk [vmem:[#allocation4] sm:$0xff] %vm1140, %v1138
  %1143 = vrot.lane.b32.xlu0 %v1132, 64
  %v1144 = vpop.permute.xlu0 %1143
  %vm1146 = vcmask 785920
  %1147 = vst.msk [vmem:[#allocation4] sm:$0xff] %vm1146, %v1144
  %1149 = vrot.lane.b32.xlu0 %v1133, 96
  %v1150 = vpop.permute.xlu0 %1149
  %vm1152 = vcmask 1048320
  %1153 = vst.msk [vmem:[#allocation4] sm:$0xff] %vm1152, %v1150
  %v1154 = vld [vmem:[#allocation4] sm:$0xff]
  %v1155 = vld [vmem:[%s5] sm:$0xff]
  %v1156 = vld [vmem:[%s5 + $0x8] sm:$0xff]
  %v1157 = vld [vmem:[%s5 + $0x10] sm:$0xff]
  %v1158 = vld [vmem:[%s5 + $0x18] sm:$0xff]
  %v1159 = vld [vmem:[%s5 + $0x20] sm:$0xff]
  %v1160 = vld [vmem:[%s5 + $0x28] sm:$0xff]
  %v1161 = vld [vmem:[%s5 + $0x30] sm:$0xff]
  %v1162 = vld [vmem:[%s5 + $0x38] sm:$0xff]
  %v1163 = vld [vmem:[%s5 + $0x40] sm:$0xff]
  %v1164 = vld [vmem:[%s5 + $0x48] sm:$0xff]
  %v1165 = vld [vmem:[%s5 + $0x50] sm:$0xff]
  %v1166 = vld [vmem:[%s5 + $0x58] sm:$0xff]
  %v1167 = vld [vmem:[%s5 + $0x60] sm:$0xff]
  %v1168 = vld [vmem:[%s5 + $0x68] sm:$0xff]
  %v1169 = vld [vmem:[%s5 + $0x70] sm:$0xff]
  %v1170 = vld [vmem:[%s5 + $0x78] sm:$0xff]
  %v1171 = vld [vmem:[%s6] sm:$0x1]
  %v1173 = vlaneseq
  %v1174 = vshrl.u32 %v1173, 7
  %v1175 = vsub.s32 0, %v1174
  %v1176 = vrot.slane %v1171, %v1175
  %1178 = vmatprep.subr.mxu0 0.0
  %1179 = vmatpush1.msra.mxu0 %v1155
  %1180 = vmatprep.subr.mxu0 0.0
  %1181 = vmatpush1.msra.mxu0 %v1156
  %1182 = vmatprep.subr.mxu0 0.0
  %1183 = vmatpush1.msra.mxu0 %v1157
  %1184 = vmatprep.subr.mxu0 0.0
  %1185 = vmatpush1.msra.mxu0 %v1158
  %1186 = vmatprep.subr.mxu0 0.0
  %1187 = vmatpush1.msra.mxu0 %v1159
  %1188 = vmatprep.subr.mxu0 0.0
  %1189 = vmatpush1.msra.mxu0 %v1160
  %1190 = vmatprep.subr.mxu0 0.0
  %1191 = vmatpush1.msra.mxu0 %v1161
  %1192 = vmatprep.subr.mxu0 0.0
  %1193 = vmatpush1.msra.mxu0 %v1162
  %1194 = vmatprep.subr.mxu0 0.0
  %1195 = vmatpush1.msra.mxu0 %v1163
  %1196 = vmatprep.subr.mxu0 0.0
  %1197 = vmatpush1.msra.mxu0 %v1164
  %1198 = vmatprep.subr.mxu0 0.0
  %1199 = vmatpush1.msra.mxu0 %v1165
  %1200 = vmatprep.subr.mxu0 0.0
  %1201 = vmatpush1.msra.mxu0 %v1166
  %1202 = vmatprep.subr.mxu0 0.0
  %1203 = vmatpush1.msra.mxu0 %v1167
  %1204 = vmatprep.subr.mxu0 0.0
  %1205 = vmatpush1.msra.mxu0 %v1168
  %1206 = vmatprep.subr.mxu0 0.0
  %1207 = vmatpush1.msra.mxu0 %v1169
  %1208 = vmatprep.subr.mxu0 0.0
  %1209 = vmatpush1.msra.mxu0 %v1170
  %1210 = vmatprep.subr.mxu0 0.0
  %1211 = vmatpush1.msra.mxu0 0.0
  %1212 = vmatprep.subr.mxu0 0.0
  %1213 = vmatpush1.msra.mxu0 0.0
  %1214 = vmatprep.subr.mxu0 0.0
  %1215 = vmatpush1.msra.mxu0 0.0
  %1216 = vmatprep.subr.mxu0 0.0
  %1217 = vmatpush1.msra.mxu0 0.0
  %1218 = vmatprep.subr.mxu0 0.0
  %1219 = vmatpush1.msra.mxu0 0.0
  %1220 = vmatprep.subr.mxu0 0.0
  %1221 = vmatpush1.msra.mxu0 0.0
  %1222 = vmatprep.subr.mxu0 0.0
  %1223 = vmatpush1.msra.mxu0 0.0
  %1224 = vmatprep.subr.mxu0 0.0
  %1225 = vmatpush1.msra.mxu0 0.0
  %1226 = vmatprep.subr.mxu0 0.0
  %1227 = vmatpush1.msra.mxu0 0.0
  %1228 = vmatprep.subr.mxu0 0.0
  %1229 = vmatpush1.msra.mxu0 0.0
  %1230 = vmatprep.subr.mxu0 0.0
  %1231 = vmatpush1.msra.mxu0 0.0
  %1232 = vmatprep.subr.mxu0 0.0
  %1233 = vmatpush1.msra.mxu0 0.0
  %1234 = vmatprep.subr.mxu0 0.0
  %1235 = vmatpush1.msra.mxu0 0.0
  %1236 = vmatprep.subr.mxu0 0.0
  %1237 = vmatpush1.msra.mxu0 0.0
  %1238 = vmatprep.subr.mxu0 0.0
  %1239 = vmatpush1.msra.mxu0 0.0
  %1240 = vmatprep.subr.mxu0 0.0
  %1241 = vmatpush1.msra.mxu0 0.0
  %1242 = vmatprep.mubr.f32.mxu0 0.0
  %1243 = vmatmul.mubr.f32.gmra.mrb[0].mxu0 %v1154
  %v1244 = vpop.f32.mrb[0].mxu0
  %v1245 = vadd.f32 %v1176, %v1244
  %v1246 = vpop.f32.mrb[0].mxu0
  %1247 = vdwg.mxu0
  %v1248 = vmax.f32 %v1245, 0.0
  %v1249 = vld [vmem:[%s7] sm:$0xff]
  %v1250 = vld [vmem:[%s7 + $0x8] sm:$0xff]
  %v1251 = vld [vmem:[%s7 + $0x10] sm:$0xff]
  %v1252 = vld [vmem:[%s7 + $0x18] sm:$0xff]
  %v1253 = vld [vmem:[%s7 + $0x20] sm:$0xff]
  %v1254 = vld [vmem:[%s7 + $0x28] sm:$0xff]
  %v1255 = vld [vmem:[%s7 + $0x30] sm:$0xff]
  %v1256 = vld [vmem:[%s7 + $0x38] sm:$0xff]
  %v1257 = vld [vmem:[%s8] sm:$0x1]
  %v1259 = vlaneseq
  %v1260 = vshrl.u32 %v1259, 7
  %v1261 = vsub.s32 0, %v1260
  %v1262 = vrot.slane %v1257, %v1261
  %v1265 = vsel %vm917, %v1248, 0
  %1267 = vmatprep.subr.mxu0 0.0
  %1268 = vmatpush1.msra.mxu0 %v1249
  %1269 = vmatprep.subr.mxu0 0.0
  %1270 = vmatpush1.msra.mxu0 %v1250
  %1271 = vmatprep.subr.mxu0 0.0
  %1272 = vmatpush1.msra.mxu0 %v1251
  %1273 = vmatprep.subr.mxu0 0.0
  %1274 = vmatpush1.msra.mxu0 %v1252
  %1275 = vmatprep.subr.mxu0 0.0
  %1276 = vmatpush1.msra.mxu0 %v1253
  %1277 = vmatprep.subr.mxu0 0.0
  %1278 = vmatpush1.msra.mxu0 %v1254
  %1279 = vmatprep.subr.mxu0 0.0
  %1280 = vmatpush1.msra.mxu0 %v1255
  %1281 = vmatprep.subr.mxu0 0.0
  %1282 = vmatpush1.msra.mxu0 %v1256
  %1283 = vmatprep.subr.mxu0 0.0
  %1284 = vmatpush1.msra.mxu0 0.0
  %1285 = vmatprep.subr.mxu0 0.0
  %1286 = vmatpush1.msra.mxu0 0.0
  %1287 = vmatprep.subr.mxu0 0.0
  %1288 = vmatpush1.msra.mxu0 0.0
  %1289 = vmatprep.subr.mxu0 0.0
  %1290 = vmatpush1.msra.mxu0 0.0
  %1291 = vmatprep.subr.mxu0 0.0
  %1292 = vmatpush1.msra.mxu0 0.0
  %1293 = vmatprep.subr.mxu0 0.0
  %1294 = vmatpush1.msra.mxu0 0.0
  %1295 = vmatprep.subr.mxu0 0.0
  %1296 = vmatpush1.msra.mxu0 0.0
  %1297 = vmatprep.subr.mxu0 0.0
  %1298 = vmatpush1.msra.mxu0 0.0
  %1299 = vmatprep.subr.mxu0 0.0
  %1300 = vmatpush1.msra.mxu0 0.0
  %1301 = vmatprep.subr.mxu0 0.0
  %1302 = vmatpush1.msra.mxu0 0.0
  %1303 = vmatprep.subr.mxu0 0.0
  %1304 = vmatpush1.msra.mxu0 0.0
  %1305 = vmatprep.subr.mxu0 0.0
  %1306 = vmatpush1.msra.mxu0 0.0
  %1307 = vmatprep.subr.mxu0 0.0
  %1308 = vmatpush1.msra.mxu0 0.0
  %1309 = vmatprep.subr.mxu0 0.0
  %1310 = vmatpush1.msra.mxu0 0.0
  %1311 = vmatprep.subr.mxu0 0.0
  %1312 = vmatpush1.msra.mxu0 0.0
  %1313 = vmatprep.subr.mxu0 0.0
  %1314 = vmatpush1.msra.mxu0 0.0
  %1315 = vmatprep.subr.mxu0 0.0
  %1316 = vmatpush1.msra.mxu0 0.0
  %1317 = vmatprep.subr.mxu0 0.0
  %1318 = vmatpush1.msra.mxu0 0.0
  %1319 = vmatprep.subr.mxu0 0.0
  %1320 = vmatpush1.msra.mxu0 0.0
  %1321 = vmatprep.subr.mxu0 0.0
  %1322 = vmatpush1.msra.mxu0 0.0
  %1323 = vmatprep.subr.mxu0 0.0
  %1324 = vmatpush1.msra.mxu0 0.0
  %1325 = vmatprep.subr.mxu0 0.0
  %1326 = vmatpush1.msra.mxu0 0.0
  %1327 = vmatprep.subr.mxu0 0.0
  %1328 = vmatpush1.msra.mxu0 0.0
  %1329 = vmatprep.subr.mxu0 0.0
  %1330 = vmatpush1.msra.mxu0 0.0
  %1331 = vmatprep.mubr.f32.mxu0 0.0
  %1332 = vmatmul.mubr.f32.gmra.mrb[0].mxu0 %v1265
  %v1333 = vpop.f32.mrb[0].mxu0
  %v1334 = vadd.f32 %v1262, %v1333
  %v1335 = vpop.f32.mrb[0].mxu0
  %1336 = vdwg.mxu0
  %v1337 = vtanh.pop %v1334
  %1338 = vst [vmem:[%s9] sm:$0xff] %v1337
  // Predicated region
  $region38: #{actor_forward.1} parent=0 // pred_check
    _
  $region39: #{actor_forward.1} parent=0 // pred_check_branch
    %1340 = sbr.rel (0) target = $region41
  $region40: #{actor_forward.1} parent=0 // pred_region
    _
  $region41: #{actor_forward.1} parent=0 // pred_fallthru
    _
  // Predicated region
  $region42: #{actor_forward.1} parent=0 // pred_check
    _
  $region43: #{actor_forward.1} parent=0 // pred_check_branch
    %1342 = sbr.rel (0) target = $region45
  $region44: #{actor_forward.1} parent=0 // pred_region
    _
  $region45: #{actor_forward.1} parent=0 // pred_fallthru
    _

</llo_original>
